<compile_context>
chip_gen: v6e
topology: v6e:2x2x1
jax: 0.10.0
libtpu: 0.0.40
codegen_flags: <defaults>
</compile_context>

<pallas_src>
import functools

import jax
import jax.numpy as jnp
from jax import lax
from jax.experimental import pallas as pl
from jax.experimental.pallas import tpu as pltpu


def _round_up(x, m):
    return (x + m - 1) // m * m


# ---------------------------------------------------------------------------
# Kernel 1: x-path precompute (no serial dependency -> parallel over time).
#   feax[t] = bias + sum_k Wx_k @ (x_t @ L_k^T), rows ordered (gate, b, c_out).
#   The Chebyshev contraction is batched over the whole time block (TT*BCi_p
#   LHS rows per matmul) and staged through a VMEM scratch laid out (tt, k, bc)
#   so the per-timestep weight matmul reads one contiguous (K*BCi_p, Np) slab.
# ---------------------------------------------------------------------------
def feax_kernel(x_ref, lap_ref, wx_ref, b_ref, feax_ref, z_ref,
                *, K, TT, BCi_p, compute_dtype):
    Np = x_ref.shape[-1]
    xr = x_ref[...]                                   # (TT*BCi_p, Np)
    # Time-batched Chebyshev contraction: ONE matmul per k (fills MXU rows).
    for k in range(K):
        zk = jnp.dot(xr, lap_ref[k], preferred_element_type=jnp.float32)
        # aligned split reshape (BCi_p % 8 == 0) + aligned sublane-slice store
        z_ref[:, k * BCi_p:(k + 1) * BCi_p, :] = (
            zk.reshape(TT, BCi_p, Np).astype(compute_dtype))

    wx = wx_ref[...]                                  # (4*BCo_p, K*BCi_p)
    # Hoisted: JAX does not CSE broadcast_in_dim, so broadcast the bias once.
    bias_full = jnp.broadcast_to(b_ref[...], (wx.shape[0], Np))

    def step(tt, carry):
        fea = bias_full + jnp.dot(wx, z_ref[tt],
                                  preferred_element_type=jnp.float32)
        feax_ref[tt] = fea.astype(feax_ref.dtype)     # lane-dense store
        return carry

    lax.fori_loop(0, TT, step, None, unroll=True)


# ---------------------------------------------------------------------------
# Kernel 2: sequential LSTM recurrence (h-path GCN only).  h/c live in VMEM
# scratch and persist across grid steps (grid axis is "arbitrary").
# ---------------------------------------------------------------------------
def recur_kernel(feax_ref, lap_ref, wh_ref, out_ref, h_ref, c_ref, zh_ref,
                 *, K, TT, BCo_p, compute_dtype):
    @pl.when(pl.program_id(0) == 0)
    def _():
        h_ref[...] = jnp.zeros_like(h_ref)
        c_ref[...] = jnp.zeros_like(c_ref)

    wh = wh_ref[...]                                   # (4*BCo_p, K*BCo_p)

    def step(tt, carry):
        h16 = h_ref[...].astype(compute_dtype)         # (BCo_p, Np)
        # No per-step concatenate: write each k-result at an aligned offset of
        # a persistent scratch, then one fused weight matmul.
        for k in range(K):
            zh_ref[k * BCo_p:(k + 1) * BCo_p, :] = jnp.dot(
                h16, lap_ref[k],
                preferred_element_type=jnp.float32).astype(compute_dtype)
        fea = feax_ref[tt].astype(jnp.float32) + jnp.dot(
            wh, zh_ref[...], preferred_element_type=jnp.float32)
        # gate slices at multiples of BCo_p (always sublane-tile aligned)
        ig = fea[0 * BCo_p:1 * BCo_p]
        jg = fea[1 * BCo_p:2 * BCo_p]
        fg = fea[2 * BCo_p:3 * BCo_p]
        og = fea[3 * BCo_p:4 * BCo_p]
        new_c = (c_ref[...] * jax.nn.sigmoid(fg)
                 + jax.nn.sigmoid(ig) * jnp.tanh(jg))
        new_h = jnp.tanh(new_c) * jax.nn.sigmoid(og)
        c_ref[...] = new_c
        h_ref[...] = new_h
        out_ref[tt] = new_h                             # lane-dense f32 store
        return carry

    lax.fori_loop(0, TT, step, None, unroll=True)


# ---------------------------------------------------------------------------
# Wrapper
# ---------------------------------------------------------------------------
def st_block_5_pallas(x, supports, w_conv, b_conv, *, c_out, K,
                      time_block_x=None, time_block_h=8,
                      compute_dtype=jnp.bfloat16):
    """x: (B, c_in, N, T) f32; supports: (N, N); returns (B, c_out, N, T) f32."""
    B, c_in, N, T = x.shape
    C = c_in + c_out
    f32 = jnp.float32

    Np = _round_up(N, 128)                   # lane-dense node axis
    BCi, BCo = B * c_in, B * c_out
    BCi_p = _round_up(BCi, 8)                # sublane-aligned row groups
    BCo_p = _round_up(BCo, 8)
    G = 4 * BCo_p                            # gate rows (i|j|f|o)

    # ---- decoupled time blocks for the two passes ---------------------------
    if time_block_x is None:
        # fill MXU rows (256-wide on v6e/v7x; >=128 already saturates v5e)
        TT_x = max(1, min(T, pl.cdiv(256, BCi_p)))
    else:
        TT_x = max(1, min(T, time_block_x))
    if T >= 2 and _round_up(T, TT_x) // TT_x < 2:
        TT_x = pl.cdiv(T, 2)                 # keep grid >= 2 (v7x megacore)
    Tp = _round_up(T, TT_x)
    TT_h = max(1, min(Tp, time_block_h))     # serial pass: amortize grid overhead
    while Tp % TT_h:
        TT_h -= 1
    grid_tx, grid_th = Tp // TT_x, Tp // TT_h

    # ---- Chebyshev stack (built in f32), transposed, lane-padded ------------
    A = supports.astype(f32)
    Ls = [jnp.eye(N, dtype=f32), A]
    for _ in range(2, K):
        Ls.append(2.0 * A @ Ls[-1] - Ls[-2])
    lap = jnp.stack([l.T for l in Ls], 0)                       # (K, N, N)
    lap = jnp.pad(lap, ((0, 0), (0, Np - N), (0, Np - N)))      # zero pad
    lap = lap.astype(compute_dtype)
    # TODO(synk): for very large graphs on v7x (64 MiB VMEM) add a lane-tiling
    # grid axis over Np in pass 1 and stream L_k column blocks (emit_pipeline)
    # in pass 2 instead of keeping the full (K, Np, Np) stack resident.

    # ---- split & fuse conv weights (PyTorch flattening: column m = c*K + k) -
    w_kc = jnp.transpose(w_conv.reshape(4 * c_out, C, K), (2, 0, 1))  # (K,4co,C)
    wx4 = w_kc[:, :, :c_in].reshape(K, 4, c_out, c_in)
    wh4 = w_kc[:, :, c_in:].reshape(K, 4, c_out, c_out)
    eyeB = jnp.eye(B, dtype=f32)
    # block-diagonal over batch: rows = (g, b, o), cols = (k, b, c); padded to
    # BCo_p / BCi_p so gate slices & k-blocks are tile aligned for any B, c.
    wx_big = jnp.einsum('kgoc,bd->gbokdc', wx4, eyeB).reshape(4, BCo, K, BCi)
    wx_big = jnp.pad(wx_big, ((0, 0), (0, BCo_p - BCo), (0, 0), (0, BCi_p - BCi)))
    wx_big = wx_big.reshape(G, K * BCi_p).astype(compute_dtype)
    wh_big = jnp.einsum('kgoc,bd->gbokdc', wh4, eyeB).reshape(4, BCo, K, BCo)
    wh_big = jnp.pad(wh_big, ((0, 0), (0, BCo_p - BCo), (0, 0), (0, BCo_p - BCo)))
    wh_big = wh_big.reshape(G, K * BCo_p).astype(compute_dtype)
    bias_big = jnp.broadcast_to(b_conv.reshape(4, 1, c_out).astype(f32),
                                (4, B, c_out)).reshape(4, BCo)
    bias_big = jnp.pad(bias_big, ((0, 0), (0, BCo_p - BCo))).reshape(G, 1)

    # ---- x to time-major, batch-merged rows, row/lane/time zero padding -----
    x_tm = jnp.transpose(x, (3, 0, 1, 2)).reshape(T, BCi, N).astype(f32)
    x_tm = jnp.pad(x_tm, ((0, Tp - T), (0, BCi_p - BCi), (0, Np - N)))
    x_tm = x_tm.reshape(Tp * BCi_p, Np).astype(compute_dtype)   # 2D, no in-kernel merge

    # ---- advisory cost estimates --------------------------------------------
    cb = jnp.dtype(compute_dtype).itemsize
    cost1 = pl.CostEstimate(
        flops=2 * Tp * (K * BCi_p * Np * Np + G * K * BCi_p * Np),
        transcendentals=0,
        bytes_accessed=(Tp * BCi_p * Np + K * Np * Np + G * K * BCi_p
                        + Tp * G * Np) * cb + G * 4)
    cost2 = pl.CostEstimate(
        flops=2 * Tp * (K * BCo_p * Np * Np + G * K * BCo_p * Np)
              + 10 * Tp * BCo_p * Np,
        transcendentals=5 * Tp * BCo_p * Np,
        bytes_accessed=(Tp * G * Np + K * Np * Np + G * K * BCo_p) * cb
                       + Tp * BCo_p * Np * 4)

    vmem_limit = 64 * 1024 * 1024

    def run(single_buffer_constants):
        def cspec(shape, index_map):
            # Constant-index blocks never change -> single-buffer them so the
            # resident Chebyshev stack / weights are not duplicated in VMEM.
            if single_buffer_constants:
                return pl.BlockSpec(shape, index_map,
                                    pipeline_mode=pl.Buffered(1))
            return pl.BlockSpec(shape, index_map)

        # --- pass 1: x-projection for all timesteps (time-parallel) ---------
        feax = pl.pallas_call(
            functools.partial(feax_kernel, K=K, TT=TT_x, BCi_p=BCi_p,
                              compute_dtype=compute_dtype),
            out_shape=jax.ShapeDtypeStruct((Tp, G, Np), compute_dtype),
            grid_spec=pltpu.PrefetchScalarGridSpec(
                num_scalar_prefetch=0,
                grid=(grid_tx,),
                in_specs=[
                    pl.BlockSpec((TT_x * BCi_p, Np), lambda i: (i, 0)),   # x
                    cspec((K, Np, Np), lambda i: (0, 0, 0)),              # Cheby
                    cspec((G, K * BCi_p), lambda i: (0, 0)),              # Wx
                    cspec((G, 1), lambda i: (0, 0)),                      # bias
                ],
                out_specs=pl.BlockSpec((TT_x, G, Np), lambda i: (i, 0, 0)),
                scratch_shapes=[
                    pltpu.VMEM((TT_x, K * BCi_p, Np), compute_dtype),     # z
                ],
            ),
            compiler_params=pltpu.CompilerParams(
                dimension_semantics=("parallel",),        # megacore-shardable
                vmem_limit_bytes=vmem_limit),
            cost_estimate=cost1,
        )(x_tm, lap, wx_big, bias_big)

        # --- pass 2: sequential LSTM recurrence over time blocks ------------
        out_tm = pl.pallas_call(
            functools.partial(recur_kernel, K=K, TT=TT_h, BCo_p=BCo_p,
                              compute_dtype=compute_dtype),
            out_shape=jax.ShapeDtypeStruct((Tp, BCo_p, Np), f32),
            grid_spec=pltpu.PrefetchScalarGridSpec(
                num_scalar_prefetch=0,
                grid=(grid_th,),
                in_specs=[
                    pl.BlockSpec((TT_h, G, Np), lambda i: (i, 0, 0)),     # fea_x
                    cspec((K, Np, Np), lambda i: (0, 0, 0)),              # Cheby
                    cspec((G, K * BCo_p), lambda i: (0, 0)),              # Wh
                ],
                out_specs=pl.BlockSpec((TT_h, BCo_p, Np), lambda i: (i, 0, 0)),
                scratch_shapes=[
                    pltpu.VMEM((BCo_p, Np), f32),              # h state
                    pltpu.VMEM((BCo_p, Np), f32),              # c state
                    pltpu.VMEM((K * BCo_p, Np), compute_dtype),  # h-path Cheby
                ],
            ),
            compiler_params=pltpu.CompilerParams(
                dimension_semantics=("arbitrary",),        # serial recurrence
                vmem_limit_bytes=vmem_limit),
            cost_estimate=cost2,
        )(feax, lap, wh_big)
        return out_tm

    try:
        out_tm = run(True)
    except Exception:
        # pipeline_mode=pl.Buffered(1) is the only experimental knob used; if
        # this jax/libtpu combo rejects it, fall back to default buffering.
        out_tm = run(False)

    # ---- back to (B, c_out, N, T), dropping row / lane / time padding -------
    out = out_tm[:T, :BCo, :N].reshape(T, B, c_out, N)
    return jnp.transpose(out, (1, 2, 3, 0))


# ---------------------------------------------------------------------------
# Pure-JAX reference mirroring the PyTorch forward.
# ---------------------------------------------------------------------------
def st_block_5_ref(x, supports, w_conv, b_conv, *, c_out, K):
    B, c_in, N, T = x.shape
    Ls = [jnp.eye(N, dtype=jnp.float32), supports]
    for _ in range(2, K):
        Ls.append(2.0 * supports @ Ls[-1] - Ls[-2])
    Lap = jnp.transpose(jnp.stack(Ls, 0), (0, 2, 1))          # (K, N, N)
    h = jnp.zeros((B, c_out, N), jnp.float32)
    c = jnp.zeros((B, c_out, N), jnp.float32)
    outs = []
    for t in range(T):
        cat = jnp.concatenate([x[:, :, :, t], h], axis=1)
        y = jnp.einsum('bcn,knq->bckq', cat, Lap).reshape(B, -1, N)
        fea = jnp.einsum('om,bmn->bon', w_conv, y) + b_conv[None, :, None]
        i, j, f, o = jnp.split(fea, 4, axis=1)
        c = c * jax.nn.sigmoid(f) + jax.nn.sigmoid(i) * jnp.tanh(j)
        h = jnp.tanh(c) * jax.nn.sigmoid(o)
        outs.append(h)
    return jnp.stack(outs, -1)


if __name__ == "__main__":
    # Small shapes implied by the module: x is (B, c_in, num_nodes, tem_size).
    B, c_in, c_out, N, T, K = 2, 4, 4, 16, 8, 3
    C = c_in + c_out

    key = jax.random.PRNGKey(0)
    kx, ka, kw, kb = jax.random.split(key, 4)
    x = jax.random.normal(kx, (B, c_in, N, T), jnp.float32)
    supports = 0.3 * jax.random.normal(ka, (N, N), jnp.float32)   # "laplacian"
    fan_in = K * C
    bound = 1.0 / (fan_in ** 0.5)
    w_conv = jax.random.uniform(kw, (4 * c_out, K * C), jnp.float32,
                                minval=-bound, maxval=bound)
    b_conv = jax.random.uniform(kb, (4 * c_out,), jnp.float32,
                                minval=-bound, maxval=bound)

    ref = st_block_5_ref(x, supports, w_conv, b_conv, c_out=c_out, K=K)

    # f32 MXU operands: validates the restructured algorithm itself.
    out_f32 = st_block_5_pallas(x, supports, w_conv, b_conv, c_out=c_out, K=K,
                                compute_dtype=jnp.float32)
    out_f32 = jax.block_until_ready(out_f32)
    assert out_f32.shape == (B, c_out, N, T)
    assert jnp.allclose(out_f32, ref, rtol=1e-2, atol=1e-2), (
        float(jnp.max(jnp.abs(out_f32 - ref))))

    # bf16 MXU operands + bf16 fea_x intermediate (perf path), f32 gates/state.
    out_bf16 = st_block_5_pallas(x, supports, w_conv, b_conv, c_out=c_out, K=K,
                                 compute_dtype=jnp.bfloat16)
    out_bf16 = jax.block_until_ready(out_bf16)
    assert out_bf16.shape == (B, c_out, N, T)
    assert jnp.allclose(out_bf16, ref, rtol=7.5e-2, atol=7.5e-2), (
        float(jnp.max(jnp.abs(out_bf16 - ref))))

    print("KERNEL_OK")
</pallas_src>

<mosaic_0001>
module attributes {stable_mosaic.version = 11 : i64} {
  func.func @feax_kernel(%arg0: i32, %arg1: memref<32x128xf32, #tpu.memory_space<vmem>>, %arg2: memref<3x128x128xf32, #tpu.memory_space<vmem>>, %arg3: memref<32x24xf32, #tpu.memory_space<vmem>>, %arg4: memref<32x1xf32, #tpu.memory_space<vmem>>, %arg5: memref<4x32x128xf32, #tpu.memory_space<vmem>>, %arg6: memref<4x24x128xf32, #tpu.memory_space<vmem>>) attributes {dimension_semantics = [#tpu.dimension_semantics<parallel>], iteration_bounds = array<i64: 2>, scalar_prefetch = 0 : i64, scratch_operands = 1 : i64, tpu.core_type = #tpu.core_type<tc>, window_params = [{transform_indices = @transform_0, window_bounds = array<i64: 32, 128>}, {pipeline_mode = #tpu.pipeline_mode<synchronous>, transform_indices = @transform_1, window_bounds = array<i64: 3, 128, 128>}, {pipeline_mode = #tpu.pipeline_mode<synchronous>, transform_indices = @transform_2, window_bounds = array<i64: 32, 24>}, {pipeline_mode = #tpu.pipeline_mode<synchronous>, transform_indices = @transform_3, window_bounds = array<i64: 32, 1>}, {transform_indices = @transform_4, window_bounds = array<i64: 4, 32, 128>}]} {
    %c0 = arith.constant 0 : index
    %c0_0 = arith.constant 0 : index
    %0 = vector.load %arg1[%c0, %c0_0] : memref<32x128xf32, #tpu.memory_space<vmem>>, vector<32x128xf32>
    %c0_1 = arith.constant 0 : index
    %c0_2 = arith.constant 0 : index
    %c0_3 = arith.constant 0 : index
    %1 = vector.load %arg2[%c0_1, %c0_2, %c0_3] : memref<3x128x128xf32, #tpu.memory_space<vmem>>, vector<1x128x128xf32>
    %2 = vector.shape_cast %1 : vector<1x128x128xf32> to vector<128x128xf32>
    %cst = arith.constant dense<0.000000e+00> : vector<32x128xf32>
    %3 = tpu.matmul %0, %2, %cst {dimension_numbers = #tpu.dot_dimension_numbers<[1], [0], [0], [1], [0, 0, 1, 1], [], []>} : vector<32x128xf32>, vector<128x128xf32>, vector<32x128xf32> -> vector<32x128xf32>
    %4 = vector.shape_cast %3 : vector<32x128xf32> to vector<4x8x128xf32>
    %c0_4 = arith.constant 0 : index
    %c0_5 = arith.constant 0 : index
    %c0_6 = arith.constant 0 : index
    %5 = vector.load %arg6[%c0_4, %c0_5, %c0_6] : memref<4x24x128xf32, #tpu.memory_space<vmem>>, vector<4x8x128xf32>
    tpu.vector_store %arg6[%c0_4, %c0_5, %c0_6], %4 {strides = array<i32>} : memref<4x24x128xf32, #tpu.memory_space<vmem>>, vector<4x8x128xf32>,
    %c1 = arith.constant 1 : index
    %c0_7 = arith.constant 0 : index
    %c0_8 = arith.constant 0 : index
    %6 = vector.load %arg2[%c1, %c0_7, %c0_8] : memref<3x128x128xf32, #tpu.memory_space<vmem>>, vector<1x128x128xf32>
    %7 = vector.shape_cast %6 : vector<1x128x128xf32> to vector<128x128xf32>
    %cst_9 = arith.constant dense<0.000000e+00> : vector<32x128xf32>
    %8 = tpu.matmul %0, %7, %cst_9 {dimension_numbers = #tpu.dot_dimension_numbers<[1], [0], [0], [1], [0, 0, 1, 1], [], []>} : vector<32x128xf32>, vector<128x128xf32>, vector<32x128xf32> -> vector<32x128xf32>
    %9 = vector.shape_cast %8 : vector<32x128xf32> to vector<4x8x128xf32>
    %c0_10 = arith.constant 0 : index
    %c8 = arith.constant 8 : index
    %c0_11 = arith.constant 0 : index
    %10 = vector.load %arg6[%c0_10, %c8, %c0_11] : memref<4x24x128xf32, #tpu.memory_space<vmem>>, vector<4x8x128xf32>
    tpu.vector_store %arg6[%c0_10, %c8, %c0_11], %9 {strides = array<i32>} : memref<4x24x128xf32, #tpu.memory_space<vmem>>, vector<4x8x128xf32>,
    %c2 = arith.constant 2 : index
    %c0_12 = arith.constant 0 : index
    %c0_13 = arith.constant 0 : index
    %11 = vector.load %arg2[%c2, %c0_12, %c0_13] : memref<3x128x128xf32, #tpu.memory_space<vmem>>, vector<1x128x128xf32>
    %12 = vector.shape_cast %11 : vector<1x128x128xf32> to vector<128x128xf32>
    %cst_14 = arith.constant dense<0.000000e+00> : vector<32x128xf32>
    %13 = tpu.matmul %0, %12, %cst_14 {dimension_numbers = #tpu.dot_dimension_numbers<[1], [0], [0], [1], [0, 0, 1, 1], [], []>} : vector<32x128xf32>, vector<128x128xf32>, vector<32x128xf32> -> vector<32x128xf32>
    %14 = vector.shape_cast %13 : vector<32x128xf32> to vector<4x8x128xf32>
    %c0_15 = arith.constant 0 : index
    %c16 = arith.constant 16 : index
    %c0_16 = arith.constant 0 : index
    %15 = vector.load %arg6[%c0_15, %c16, %c0_16] : memref<4x24x128xf32, #tpu.memory_space<vmem>>, vector<4x8x128xf32>
    tpu.vector_store %arg6[%c0_15, %c16, %c0_16], %14 {strides = array<i32>} : memref<4x24x128xf32, #tpu.memory_space<vmem>>, vector<4x8x128xf32>,
    %c0_17 = arith.constant 0 : index
    %c0_18 = arith.constant 0 : index
    %16 = vector.load %arg3[%c0_17, %c0_18] : memref<32x24xf32, #tpu.memory_space<vmem>>, vector<32x24xf32>
    %c0_19 = arith.constant 0 : index
    %c0_20 = arith.constant 0 : index
    %17 = vector.load %arg4[%c0_19, %c0_20] : memref<32x1xf32, #tpu.memory_space<vmem>>, vector<32x1xf32>
    %18 = vector.shape_cast %17 : vector<32x1xf32> to vector<32x1xf32>
    %19 = vector.broadcast %18 : vector<32x1xf32> to vector<32x128xf32>
    %c0_i32 = arith.constant 0 : i32
    %20 = arith.index_cast %c0_i32 : i32 to index
    %c0_21 = arith.constant 0 : index
    %c0_22 = arith.constant 0 : index
    %21 = vector.load %arg6[%20, %c0_21, %c0_22] : memref<4x24x128xf32, #tpu.memory_space<vmem>>, vector<1x24x128xf32>
    %22 = vector.shape_cast %21 : vector<1x24x128xf32> to vector<24x128xf32>
    %cst_23 = arith.constant dense<0.000000e+00> : vector<32x128xf32>
    %23 = tpu.matmul %16, %22, %cst_23 {dimension_numbers = #tpu.dot_dimension_numbers<[1], [0], [0], [1], [0, 0, 1, 1], [], []>} : vector<32x24xf32>, vector<24x128xf32>, vector<32x128xf32> -> vector<32x128xf32>
    %24 = arith.addf %19, %23 : vector<32x128xf32>
    %25 = arith.index_cast %c0_i32 : i32 to index
    %c0_24 = arith.constant 0 : index
    %c0_25 = arith.constant 0 : index
    %26 = vector.load %arg5[%25, %c0_24, %c0_25] : memref<4x32x128xf32, #tpu.memory_space<vmem>>, vector<1x32x128xf32>
    %27 = vector.shape_cast %26 : vector<1x32x128xf32> to vector<32x128xf32>
    %28 = vector.shape_cast %24 : vector<32x128xf32> to vector<1x32x128xf32>
    tpu.vector_store %arg5[%25, %c0_24, %c0_25], %28 {strides = array<i32>} : memref<4x32x128xf32, #tpu.memory_space<vmem>>, vector<1x32x128xf32>,
    %c1_i32 = arith.constant 1 : i32
    %29 = arith.index_cast %c1_i32 : i32 to index
    %c0_26 = arith.constant 0 : index
    %c0_27 = arith.constant 0 : index
    %30 = vector.load %arg6[%29, %c0_26, %c0_27] : memref<4x24x128xf32, #tpu.memory_space<vmem>>, vector<1x24x128xf32>
    %31 = vector.shape_cast %30 : vector<1x24x128xf32> to vector<24x128xf32>
    %cst_28 = arith.constant dense<0.000000e+00> : vector<32x128xf32>
    %32 = tpu.matmul %16, %31, %cst_28 {dimension_numbers = #tpu.dot_dimension_numbers<[1], [0], [0], [1], [0, 0, 1, 1], [], []>} : vector<32x24xf32>, vector<24x128xf32>, vector<32x128xf32> -> vector<32x128xf32>
    %33 = arith.addf %19, %32 : vector<32x128xf32>
    %34 = arith.index_cast %c1_i32 : i32 to index
    %c0_29 = arith.constant 0 : index
    %c0_30 = arith.constant 0 : index
    %35 = vector.load %arg5[%34, %c0_29, %c0_30] : memref<4x32x128xf32, #tpu.memory_space<vmem>>, vector<1x32x128xf32>
    %36 = vector.shape_cast %35 : vector<1x32x128xf32> to vector<32x128xf32>
    %37 = vector.shape_cast %33 : vector<32x128xf32> to vector<1x32x128xf32>
    tpu.vector_store %arg5[%34, %c0_29, %c0_30], %37 {strides = array<i32>} : memref<4x32x128xf32, #tpu.memory_space<vmem>>, vector<1x32x128xf32>,
    %c2_i32 = arith.constant 2 : i32
    %38 = arith.index_cast %c2_i32 : i32 to index
    %c0_31 = arith.constant 0 : index
    %c0_32 = arith.constant 0 : index
    %39 = vector.load %arg6[%38, %c0_31, %c0_32] : memref<4x24x128xf32, #tpu.memory_space<vmem>>, vector<1x24x128xf32>
    %40 = vector.shape_cast %39 : vector<1x24x128xf32> to vector<24x128xf32>
    %cst_33 = arith.constant dense<0.000000e+00> : vector<32x128xf32>
    %41 = tpu.matmul %16, %40, %cst_33 {dimension_numbers = #tpu.dot_dimension_numbers<[1], [0], [0], [1], [0, 0, 1, 1], [], []>} : vector<32x24xf32>, vector<24x128xf32>, vector<32x128xf32> -> vector<32x128xf32>
    %42 = arith.addf %19, %41 : vector<32x128xf32>
    %43 = arith.index_cast %c2_i32 : i32 to index
    %c0_34 = arith.constant 0 : index
    %c0_35 = arith.constant 0 : index
    %44 = vector.load %arg5[%43, %c0_34, %c0_35] : memref<4x32x128xf32, #tpu.memory_space<vmem>>, vector<1x32x128xf32>
    %45 = vector.shape_cast %44 : vector<1x32x128xf32> to vector<32x128xf32>
    %46 = vector.shape_cast %42 : vector<32x128xf32> to vector<1x32x128xf32>
    tpu.vector_store %arg5[%43, %c0_34, %c0_35], %46 {strides = array<i32>} : memref<4x32x128xf32, #tpu.memory_space<vmem>>, vector<1x32x128xf32>,
    %c3_i32 = arith.constant 3 : i32
    %47 = arith.index_cast %c3_i32 : i32 to index
    %c0_36 = arith.constant 0 : index
    %c0_37 = arith.constant 0 : index
    %48 = vector.load %arg6[%47, %c0_36, %c0_37] : memref<4x24x128xf32, #tpu.memory_space<vmem>>, vector<1x24x128xf32>
    %49 = vector.shape_cast %48 : vector<1x24x128xf32> to vector<24x128xf32>
    %cst_38 = arith.constant dense<0.000000e+00> : vector<32x128xf32>
    %50 = tpu.matmul %16, %49, %cst_38 {dimension_numbers = #tpu.dot_dimension_numbers<[1], [0], [0], [1], [0, 0, 1, 1], [], []>} : vector<32x24xf32>, vector<24x128xf32>, vector<32x128xf32> -> vector<32x128xf32>
    %51 = arith.addf %19, %50 : vector<32x128xf32>
    %52 = arith.index_cast %c3_i32 : i32 to index
    %c0_39 = arith.constant 0 : index
    %c0_40 = arith.constant 0 : index
    %53 = vector.load %arg5[%52, %c0_39, %c0_40] : memref<4x32x128xf32, #tpu.memory_space<vmem>>, vector<1x32x128xf32>
    %54 = vector.shape_cast %53 : vector<1x32x128xf32> to vector<32x128xf32>
    %55 = vector.shape_cast %51 : vector<32x128xf32> to vector<1x32x128xf32>
    tpu.vector_store %arg5[%52, %c0_39, %c0_40], %55 {strides = array<i32>} : memref<4x32x128xf32, #tpu.memory_space<vmem>>, vector<1x32x128xf32>,
    %c4_i32 = arith.constant 4 : i32
    return
  }
  func.func @transform_0(%arg0: i32) -> (i32, i32) {
    %c0_i32 = arith.constant 0 : i32
    %c0_i32_0 = arith.constant 0 : i32
    return %arg0, %c0_i32 : i32, i32
  }
  func.func @transform_1(%arg0: i32) -> (i32, i32, i32) {
    %c0_i32 = arith.constant 0 : i32
    %c0_i32_0 = arith.constant 0 : i32
    %c0_i32_1 = arith.constant 0 : i32
    %c0_i32_2 = arith.constant 0 : i32
    return %c0_i32, %c0_i32_0, %c0_i32_1 : i32, i32, i32
  }
  func.func @transform_2(%arg0: i32) -> (i32, i32) {
    %c0_i32 = arith.constant 0 : i32
    %c0_i32_0 = arith.constant 0 : i32
    %c0_i32_1 = arith.constant 0 : i32
    return %c0_i32, %c0_i32_0 : i32, i32
  }
  func.func @transform_3(%arg0: i32) -> (i32, i32) {
    %c0_i32 = arith.constant 0 : i32
    %c0_i32_0 = arith.constant 0 : i32
    %c0_i32_1 = arith.constant 0 : i32
    return %c0_i32, %c0_i32_0 : i32, i32
  }
  func.func @transform_4(%arg0: i32) -> (i32, i32, i32) {
    %c0_i32 = arith.constant 0 : i32
    %c0_i32_0 = arith.constant 0 : i32
    %c0_i32_1 = arith.constant 0 : i32
    return %arg0, %c0_i32, %c0_i32_0 : i32, i32, i32
  }
}

module attributes {stable_mosaic.version = 11 : i64} {
  func.func @feax_kernel(%arg0: i32, %arg1: memref<32x128xf32, #tpu.memory_space<vmem>>, %arg2: memref<3x128x128xf32, #tpu.memory_space<vmem>>, %arg3: memref<32x24xf32, #tpu.memory_space<vmem>>, %arg4: memref<32x1xf32, #tpu.memory_space<vmem>>, %arg5: memref<4x32x128xf32, #tpu.memory_space<vmem>>, %arg6: memref<4x24x128xf32, #tpu.memory_space<vmem>>) attributes {dimension_semantics = [#tpu.dimension_semantics<parallel>], iteration_bounds = array<i64: 2>, scalar_prefetch = 0 : i64, scratch_operands = 1 : i64, tpu.core_type = #tpu.core_type<tc>, window_params = [{transform_indices = @transform_0, window_bounds = array<i64: 32, 128>}, {pipeline_mode = #tpu.pipeline_mode<synchronous>, transform_indices = @transform_1, window_bounds = array<i64: 3, 128, 128>}, {pipeline_mode = #tpu.pipeline_mode<synchronous>, transform_indices = @transform_2, window_bounds = array<i64: 32, 24>}, {pipeline_mode = #tpu.pipeline_mode<synchronous>, transform_indices = @transform_3, window_bounds = array<i64: 32, 1>}, {transform_indices = @transform_4, window_bounds = array<i64: 4, 32, 128>}]} {
    %c0 = arith.constant 0 : index
    %c0_0 = arith.constant 0 : index
    %0 = vector.load %arg1[%c0, %c0_0] : memref<32x128xf32, #tpu.memory_space<vmem>>, vector<32x128xf32>
    %c0_1 = arith.constant 0 : index
    %c0_2 = arith.constant 0 : index
    %c0_3 = arith.constant 0 : index
    %1 = vector.load %arg2[%c0_1, %c0_2, %c0_3] : memref<3x128x128xf32, #tpu.memory_space<vmem>>, vector<1x128x128xf32>
    %2 = vector.shape_cast %1 : vector<1x128x128xf32> to vector<128x128xf32>
    %cst = arith.constant dense<0.000000e+00> : vector<32x128xf32>
    %3 = tpu.matmul %0, %2, %cst {dimension_numbers = #tpu.dot_dimension_numbers<[1], [0], [0], [1], [0, 0, 1, 1], [], []>} : vector<32x128xf32>, vector<128x128xf32>, vector<32x128xf32> -> vector<32x128xf32>
    %4 = vector.shape_cast %3 : vector<32x128xf32> to vector<4x8x128xf32>
    %c0_4 = arith.constant 0 : index
    %c0_5 = arith.constant 0 : index
    %c0_6 = arith.constant 0 : index
    %5 = vector.load %arg6[%c0_4, %c0_5, %c0_6] : memref<4x24x128xf32, #tpu.memory_space<vmem>>, vector<4x8x128xf32>
    tpu.vector_store %arg6[%c0_4, %c0_5, %c0_6], %4 {strides = array<i32>} : memref<4x24x128xf32, #tpu.memory_space<vmem>>, vector<4x8x128xf32>,
    %c1 = arith.constant 1 : index
    %c0_7 = arith.constant 0 : index
    %c0_8 = arith.constant 0 : index
    %6 = vector.load %arg2[%c1, %c0_7, %c0_8] : memref<3x128x128xf32, #tpu.memory_space<vmem>>, vector<1x128x128xf32>
    %7 = vector.shape_cast %6 : vector<1x128x128xf32> to vector<128x128xf32>
    %cst_9 = arith.constant dense<0.000000e+00> : vector<32x128xf32>
    %8 = tpu.matmul %0, %7, %cst_9 {dimension_numbers = #tpu.dot_dimension_numbers<[1], [0], [0], [1], [0, 0, 1, 1], [], []>} : vector<32x128xf32>, vector<128x128xf32>, vector<32x128xf32> -> vector<32x128xf32>
    %9 = vector.shape_cast %8 : vector<32x128xf32> to vector<4x8x128xf32>
    %c0_10 = arith.constant 0 : index
    %c8 = arith.constant 8 : index
    %c0_11 = arith.constant 0 : index
    %10 = vector.load %arg6[%c0_10, %c8, %c0_11] : memref<4x24x128xf32, #tpu.memory_space<vmem>>, vector<4x8x128xf32>
    tpu.vector_store %arg6[%c0_10, %c8, %c0_11], %9 {strides = array<i32>} : memref<4x24x128xf32, #tpu.memory_space<vmem>>, vector<4x8x128xf32>,
    %c2 = arith.constant 2 : index
    %c0_12 = arith.constant 0 : index
    %c0_13 = arith.constant 0 : index
    %11 = vector.load %arg2[%c2, %c0_12, %c0_13] : memref<3x128x128xf32, #tpu.memory_space<vmem>>, vector<1x128x128xf32>
    %12 = vector.shape_cast %11 : vector<1x128x128xf32> to vector<128x128xf32>
    %cst_14 = arith.constant dense<0.000000e+00> : vector<32x128xf32>
    %13 = tpu.matmul %0, %12, %cst_14 {dimension_numbers = #tpu.dot_dimension_numbers<[1], [0], [0], [1], [0, 0, 1, 1], [], []>} : vector<32x128xf32>, vector<128x128xf32>, vector<32x128xf32> -> vector<32x128xf32>
    %14 = vector.shape_cast %13 : vector<32x128xf32> to vector<4x8x128xf32>
    %c0_15 = arith.constant 0 : index
    %c16 = arith.constant 16 : index
    %c0_16 = arith.constant 0 : index
    %15 = vector.load %arg6[%c0_15, %c16, %c0_16] : memref<4x24x128xf32, #tpu.memory_space<vmem>>, vector<4x8x128xf32>
    tpu.vector_store %arg6[%c0_15, %c16, %c0_16], %14 {strides = array<i32>} : memref<4x24x128xf32, #tpu.memory_space<vmem>>, vector<4x8x128xf32>,
    %c0_17 = arith.constant 0 : index
    %c0_18 = arith.constant 0 : index
    %16 = vector.load %arg3[%c0_17, %c0_18] : memref<32x24xf32, #tpu.memory_space<vmem>>, vector<32x24xf32>
    %c0_19 = arith.constant 0 : index
    %c0_20 = arith.constant 0 : index
    %17 = vector.load %arg4[%c0_19, %c0_20] : memref<32x1xf32, #tpu.memory_space<vmem>>, vector<32x1xf32>
    %18 = vector.shape_cast %17 : vector<32x1xf32> to vector<32x1xf32>
    %19 = vector.broadcast %18 : vector<32x1xf32> to vector<32x128xf32>
    %c0_i32 = arith.constant 0 : i32
    %20 = arith.index_cast %c0_i32 : i32 to index
    %c0_21 = arith.constant 0 : index
    %c0_22 = arith.constant 0 : index
    %21 = vector.load %arg6[%20, %c0_21, %c0_22] : memref<4x24x128xf32, #tpu.memory_space<vmem>>, vector<1x24x128xf32>
    %22 = vector.shape_cast %21 : vector<1x24x128xf32> to vector<24x128xf32>
    %cst_23 = arith.constant dense<0.000000e+00> : vector<32x128xf32>
    %23 = tpu.matmul %16, %22, %cst_23 {dimension_numbers = #tpu.dot_dimension_numbers<[1], [0], [0], [1], [0, 0, 1, 1], [], []>} : vector<32x24xf32>, vector<24x128xf32>, vector<32x128xf32> -> vector<32x128xf32>
    %24 = arith.addf %19, %23 : vector<32x128xf32>
    %25 = arith.index_cast %c0_i32 : i32 to index
    %c0_24 = arith.constant 0 : index
    %c0_25 = arith.constant 0 : index
    %26 = vector.load %arg5[%25, %c0_24, %c0_25] : memref<4x32x128xf32, #tpu.memory_space<vmem>>, vector<1x32x128xf32>
    %27 = vector.shape_cast %26 : vector<1x32x128xf32> to vector<32x128xf32>
    %28 = vector.shape_cast %24 : vector<32x128xf32> to vector<1x32x128xf32>
    tpu.vector_store %arg5[%25, %c0_24, %c0_25], %28 {strides = array<i32>} : memref<4x32x128xf32, #tpu.memory_space<vmem>>, vector<1x32x128xf32>,
    %c1_i32 = arith.constant 1 : i32
    %29 = arith.index_cast %c1_i32 : i32 to index
    %c0_26 = arith.constant 0 : index
    %c0_27 = arith.constant 0 : index
    %30 = vector.load %arg6[%29, %c0_26, %c0_27] : memref<4x24x128xf32, #tpu.memory_space<vmem>>, vector<1x24x128xf32>
    %31 = vector.shape_cast %30 : vector<1x24x128xf32> to vector<24x128xf32>
    %cst_28 = arith.constant dense<0.000000e+00> : vector<32x128xf32>
    %32 = tpu.matmul %16, %31, %cst_28 {dimension_numbers = #tpu.dot_dimension_numbers<[1], [0], [0], [1], [0, 0, 1, 1], [], []>} : vector<32x24xf32>, vector<24x128xf32>, vector<32x128xf32> -> vector<32x128xf32>
    %33 = arith.addf %19, %32 : vector<32x128xf32>
    %34 = arith.index_cast %c1_i32 : i32 to index
    %c0_29 = arith.constant 0 : index
    %c0_30 = arith.constant 0 : index
    %35 = vector.load %arg5[%34, %c0_29, %c0_30] : memref<4x32x128xf32, #tpu.memory_space<vmem>>, vector<1x32x128xf32>
    %36 = vector.shape_cast %35 : vector<1x32x128xf32> to vector<32x128xf32>
    %37 = vector.shape_cast %33 : vector<32x128xf32> to vector<1x32x128xf32>
    tpu.vector_store %arg5[%34, %c0_29, %c0_30], %37 {strides = array<i32>} : memref<4x32x128xf32, #tpu.memory_space<vmem>>, vector<1x32x128xf32>,
    %c2_i32 = arith.constant 2 : i32
    %38 = arith.index_cast %c2_i32 : i32 to index
    %c0_31 = arith.constant 0 : index
    %c0_32 = arith.constant 0 : index
    %39 = vector.load %arg6[%38, %c0_31, %c0_32] : memref<4x24x128xf32, #tpu.memory_space<vmem>>, vector<1x24x128xf32>
    %40 = vector.shape_cast %39 : vector<1x24x128xf32> to vector<24x128xf32>
    %cst_33 = arith.constant dense<0.000000e+00> : vector<32x128xf32>
    %41 = tpu.matmul %16, %40, %cst_33 {dimension_numbers = #tpu.dot_dimension_numbers<[1], [0], [0], [1], [0, 0, 1, 1], [], []>} : vector<32x24xf32>, vector<24x128xf32>, vector<32x128xf32> -> vector<32x128xf32>
    %42 = arith.addf %19, %41 : vector<32x128xf32>
    %43 = arith.index_cast %c2_i32 : i32 to index
    %c0_34 = arith.constant 0 : index
    %c0_35 = arith.constant 0 : index
    %44 = vector.load %arg5[%43, %c0_34, %c0_35] : memref<4x32x128xf32, #tpu.memory_space<vmem>>, vector<1x32x128xf32>
    %45 = vector.shape_cast %44 : vector<1x32x128xf32> to vector<32x128xf32>
    %46 = vector.shape_cast %42 : vector<32x128xf32> to vector<1x32x128xf32>
    tpu.vector_store %arg5[%43, %c0_34, %c0_35], %46 {strides = array<i32>} : memref<4x32x128xf32, #tpu.memory_space<vmem>>, vector<1x32x128xf32>,
    %c3_i32 = arith.constant 3 : i32
    %47 = arith.index_cast %c3_i32 : i32 to index
    %c0_36 = arith.constant 0 : index
    %c0_37 = arith.constant 0 : index
    %48 = vector.load %arg6[%47, %c0_36, %c0_37] : memref<4x24x128xf32, #tpu.memory_space<vmem>>, vector<1x24x128xf32>
    %49 = vector.shape_cast %48 : vector<1x24x128xf32> to vector<24x128xf32>
    %cst_38 = arith.constant dense<0.000000e+00> : vector<32x128xf32>
    %50 = tpu.matmul %16, %49, %cst_38 {dimension_numbers = #tpu.dot_dimension_numbers<[1], [0], [0], [1], [0, 0, 1, 1], [], []>} : vector<32x24xf32>, vector<24x128xf32>, vector<32x128xf32> -> vector<32x128xf32>
    %51 = arith.addf %19, %50 : vector<32x128xf32>
    %52 = arith.index_cast %c3_i32 : i32 to index
    %c0_39 = arith.constant 0 : index
    %c0_40 = arith.constant 0 : index
    %53 = vector.load %arg5[%52, %c0_39, %c0_40] : memref<4x32x128xf32, #tpu.memory_space<vmem>>, vector<1x32x128xf32>
    %54 = vector.shape_cast %53 : vector<1x32x128xf32> to vector<32x128xf32>
    %55 = vector.shape_cast %51 : vector<32x128xf32> to vector<1x32x128xf32>
    tpu.vector_store %arg5[%52, %c0_39, %c0_40], %55 {strides = array<i32>} : memref<4x32x128xf32, #tpu.memory_space<vmem>>, vector<1x32x128xf32>,
    %c4_i32 = arith.constant 4 : i32
    return
  }
  func.func @transform_0(%arg0: i32) -> (i32, i32) {
    %c0_i32 = arith.constant 0 : i32
    %c0_i32_0 = arith.constant 0 : i32
    return %arg0, %c0_i32 : i32, i32
  }
  func.func @transform_1(%arg0: i32) -> (i32, i32, i32) {
    %c0_i32 = arith.constant 0 : i32
    %c0_i32_0 = arith.constant 0 : i32
    %c0_i32_1 = arith.constant 0 : i32
    %c0_i32_2 = arith.constant 0 : i32
    return %c0_i32, %c0_i32_0, %c0_i32_1 : i32, i32, i32
  }
  func.func @transform_2(%arg0: i32) -> (i32, i32) {
    %c0_i32 = arith.constant 0 : i32
    %c0_i32_0 = arith.constant 0 : i32
    %c0_i32_1 = arith.constant 0 : i32
    return %c0_i32, %c0_i32_0 : i32, i32
  }
  func.func @transform_3(%arg0: i32) -> (i32, i32) {
    %c0_i32 = arith.constant 0 : i32
    %c0_i32_0 = arith.constant 0 : i32
    %c0_i32_1 = arith.constant 0 : i32
    return %c0_i32, %c0_i32_0 : i32, i32
  }
  func.func @transform_4(%arg0: i32) -> (i32, i32, i32) {
    %c0_i32 = arith.constant 0 : i32
    %c0_i32_0 = arith.constant 0 : i32
    %c0_i32_1 = arith.constant 0 : i32
    return %arg0, %c0_i32, %c0_i32_0 : i32, i32, i32
  }
}

</mosaic_0001>

<llo_original>
// kernel: tpu_custom_call.1
$region0: #{tpu_custom_call.1}
  #allocation0 [shape = 'u32[]', space=smem, size = 0x4, offset = 0x4, fixed_abs, tag = 'smem constant byte address 0x4 - core index']
  #allocation1 [shape = 'u32[144,128]{1,0:T(1,128)}', space=vmem, size = 0x12000, scoped, tag = 'internal scratch']
  #allocation2 [shape = 'f32[4,24,128]{2,1,0:T(8,128)}', space=vmem, size = 0xc000, scoped, tag = 'scratch operand']
  %s0 = inlined_call_operand.vmem [shape: f32[64,128], index: 0, kind: input, shape index: {}]
  %s1 = inlined_call_operand.hbm [shape: f32[3,128,128], index: 1, kind: input, shape index: {}]
  %s2 = inlined_call_operand.vmem [shape: f32[32,24], index: 2, kind: input, shape index: {}]
  %s3 = inlined_call_operand.vmem [shape: f32[32,1], index: 3, kind: input, shape index: {}]
  %s4 = inlined_call_operand.hbm [shape: f32[8,32,128], index: 4, kind: output, shape index: {}]
  %s5 = sld [smem:[#allocation0]]
  $region53: #{tpu_custom_call.1} parent=0
    _
  %s7 = ssub.s32 1, %s5
  %s8 = scalar_select 0, %s7, %s5
  $region1: #{tpu_custom_call.1} parent=0
    #allocation3 [shape = 'u8[196608]{0}', space=vmem, size = 0x30000, scoped, tag = 'input window, operand 1, single buffered']
    #allocation4 [shape = 's32[2]{0}', space=sflag, size = 0x8, scoped, tag = 'scoped memory for tpu_custom_call.1']
    #allocation5 [shape = 's32[2]{0}', space=sflag, size = 0x8, scoped, tag = 'scoped memory for tpu_custom_call.1']
    #allocation6 [shape = 'u8[131072]{0}', space=vmem, size = 0x20000, scoped, tag = 'output window, operand 0']
    %9 = vsyncpa [#allocation4], 0
    %10 = vsyncpa [#allocation5], 0
    %s11 = scalar_lea.sflag [#allocation5], 1
    %12 = vsyncpa %s11, 0
    loop: start=0, step=1, limit=4
    $region2: #{tpu_custom_call.1} parent=1 // loop_pre_header
      _
    $region3: #{tpu_custom_call.1} parent=1 // loop_header
      %s14 = sphi 0, %s18
      %p15 = scmp.ge.s32.totalorder %s14, 4
      %s24 = sphi 0, %s26
      %s27 = sphi 0, %s24
      %s28 = sphi 0, %s27
      %s44 = sphi 0, %s28
      %s48 = sphi 0, %s48
      %s50 = sphi 0, %s48
      %s51 = sphi 0, %s50
      %s65 = sphi 0, %s51
      %s69 = sphi 0, %s69
      %s71 = sphi 0, %s69
      %s72 = sphi 0, %s71
      %s86 = sphi 0, %s72
      %s90 = sphi 0, %s90
      %s92 = sphi 0, %s90
      %s93 = sphi 0, %s92
      %s107 = sphi 0, %s93
      %s113 = sphi 0, %s115
      %s116 = sphi 0, %s113
      %s117 = sphi 0, %s116
      %s133 = sphi 0, %s117
    $region4: #{tpu_custom_call.1} parent=1 // loop_header_branch
      %17 = sbr.rel (%p15) target = $region8
    $region5: #{tpu_custom_call.1} parent=1 // loop_body
      %s19 = ssub.s32 %s14, 1
      %s20 = ssub.s32 %s14, 2
      %s21 = sadd.s32 %s14, 1
      %s22 = ssub.s32 %s14, %s21
      %p23 = scmp.eq.s32.totalorder %s22, 0
      %s25 = sadd.s32 %s24, 1
      %s26 = scalar_select %p23, %s24, %s25
      %p29 = pneg %p23
      %p30 = scmp.eq.s32.totalorder %s14, 1
      %p31 = por %p29, %p30
      %p32 = scmp.ne.s32.totalorder %s24, %s27
      %p33 = scmp.eq.s32.totalorder %s14, 0
      %p34 = por %p32, %p33
      %p35 = scmp.ne.s32.totalorder %s24, %s27
      %p36 = scmp.eq.s32.totalorder %s19, 1
      %p37 = por %p35, %p36
      %p38 = scmp.ne.s32.totalorder %s27, %s28
      %p39 = scmp.eq.s32.totalorder %s19, 0
      %p40 = por %p38, %p39
      %p41 = scmp.ne.s32.totalorder %s27, %s28
      %p42 = scmp.eq.s32.totalorder %s20, 1
      %p43 = por %p41, %p42
      %p45 = scmp.ne.s32.totalorder %s28, %s44
      %p46 = scmp.eq.s32.totalorder %s20, 0
      %p47 = por %p45, %p46
      %s49 = sadd.s32 %s48, 1
      %p52 = scmp.eq.s32.totalorder %s14, 1
      %p53 = scmp.ne.s32.totalorder %s48, %s50
      %p54 = scmp.eq.s32.totalorder %s14, 0
      %p55 = por %p53, %p54
      %p56 = scmp.ne.s32.totalorder %s48, %s50
      %p57 = scmp.eq.s32.totalorder %s19, 1
      %p58 = por %p56, %p57
      %p59 = scmp.ne.s32.totalorder %s50, %s51
      %p60 = scmp.eq.s32.totalorder %s19, 0
      %p61 = por %p59, %p60
      %p62 = scmp.ne.s32.totalorder %s50, %s51
      %p63 = scmp.eq.s32.totalorder %s20, 1
      %p64 = por %p62, %p63
      %p66 = scmp.ne.s32.totalorder %s51, %s65
      %p67 = scmp.eq.s32.totalorder %s20, 0
      %p68 = por %p66, %p67
      %s70 = sadd.s32 %s69, 1
      %p73 = scmp.eq.s32.totalorder %s14, 1
      %p74 = scmp.ne.s32.totalorder %s69, %s71
      %p75 = scmp.eq.s32.totalorder %s14, 0
      %p76 = por %p74, %p75
      %p77 = scmp.ne.s32.totalorder %s69, %s71
      %p78 = scmp.eq.s32.totalorder %s19, 1
      %p79 = por %p77, %p78
      %p80 = scmp.ne.s32.totalorder %s71, %s72
      %p81 = scmp.eq.s32.totalorder %s19, 0
      %p82 = por %p80, %p81
      %p83 = scmp.ne.s32.totalorder %s71, %s72
      %p84 = scmp.eq.s32.totalorder %s20, 1
      %p85 = por %p83, %p84
      %p87 = scmp.ne.s32.totalorder %s72, %s86
      %p88 = scmp.eq.s32.totalorder %s20, 0
      %p89 = por %p87, %p88
      %s91 = sadd.s32 %s90, 1
      %p94 = scmp.eq.s32.totalorder %s14, 1
      %p95 = scmp.ne.s32.totalorder %s90, %s92
      %p96 = scmp.eq.s32.totalorder %s14, 0
      %p97 = por %p95, %p96
      %p98 = scmp.ne.s32.totalorder %s90, %s92
      %p99 = scmp.eq.s32.totalorder %s19, 1
      %p100 = por %p98, %p99
      %p101 = scmp.ne.s32.totalorder %s92, %s93
      %p102 = scmp.eq.s32.totalorder %s19, 0
      %p103 = por %p101, %p102
      %p104 = scmp.ne.s32.totalorder %s92, %s93
      %p105 = scmp.eq.s32.totalorder %s20, 1
      %p106 = por %p104, %p105
      %p108 = scmp.ne.s32.totalorder %s93, %s107
      %p109 = scmp.eq.s32.totalorder %s20, 0
      %p110 = por %p108, %p109
      %s111 = ssub.s32 %s14, %s21
      %p112 = scmp.eq.s32.totalorder %s111, 0
      %s114 = sadd.s32 %s113, 1
      %s115 = scalar_select %p112, %s113, %s114
      %p118 = pneg %p112
      %p119 = scmp.eq.s32.totalorder %s14, 1
      %p120 = por %p118, %p119
      %p121 = scmp.ne.s32.totalorder %s113, %s116
      %p122 = scmp.eq.s32.totalorder %s14, 0
      %p123 = por %p121, %p122
      %p124 = scmp.ne.s32.totalorder %s113, %s116
      %p125 = scmp.eq.s32.totalorder %s19, 1
      %p126 = por %p124, %p125
      %p127 = scmp.ne.s32.totalorder %s116, %s117
      %p128 = scmp.eq.s32.totalorder %s19, 0
      %p129 = por %p127, %p128
      %p130 = scmp.ne.s32.totalorder %s116, %s117
      %p131 = scmp.eq.s32.totalorder %s20, 1
      %p132 = por %p130, %p131
      %p134 = scmp.ne.s32.totalorder %s117, %s133
      %p135 = scmp.eq.s32.totalorder %s20, 0
      %p136 = por %p134, %p135
      %p137 = scmp.le.s32.totalorder 1, %s14
      %p138 = scmp.lt.s32.totalorder %s14, 3
      %p139 = pnand %p137, %p138
      %p140 = pneg %p139
      // Predicated region
      $region9: #{tpu_custom_call.1} parent=5 // pred_check
        _
      $region10: #{tpu_custom_call.1} parent=5 // pred_check_branch
        %142 = sbr.rel (%p139) target = $region12
      $region11: #{tpu_custom_call.1} parent=5 // pred_region
        %s143 = ssub.s32 %s14, 1
        // Predicated region
        $region13: #{tpu_custom_call.1} parent=11 // pred_check
          %p144 = pneg %p61
        $region14: #{tpu_custom_call.1} parent=11 // pred_check_branch
          %146 = sbr.rel (%p144) target = $region16
        $region15: #{tpu_custom_call.1} parent=11 // pred_region
          %s148 = ssub.s32 6144, 6144
          %149 = vsyncadd [#allocation4], %s148
          %s150 = sshll.u32 [#allocation3], 4
          %s151 = int_to_ptr.vmem [resolvable:$true] %s150
          %156 = dma.hbm_to_vmem [thread:$0]  %s1, 6144, %s151, [#allocation4], 128, 128, 8
        $region16: #{tpu_custom_call.1} parent=11 // pred_fallthru
          _
        // Predicated region
        $region17: #{tpu_custom_call.1} parent=11 // pred_check
          %p157 = pneg %p82
        $region18: #{tpu_custom_call.1} parent=11 // pred_check_branch
          %159 = sbr.rel (%p157) target = $region20
        $region19: #{tpu_custom_call.1} parent=11 // pred_region
          _
        $region20: #{tpu_custom_call.1} parent=11 // pred_fallthru
          _
        // Predicated region
        $region21: #{tpu_custom_call.1} parent=11 // pred_check
          %p160 = pneg %p103
        $region22: #{tpu_custom_call.1} parent=11 // pred_check_branch
          %162 = sbr.rel (%p160) target = $region24
        $region23: #{tpu_custom_call.1} parent=11 // pred_region
          _
        $region24: #{tpu_custom_call.1} parent=11 // pred_fallthru
          _
      $region12: #{tpu_custom_call.1} parent=5 // pred_fallthru
        _
      %p163 = scmp.lt.s32.totalorder %s14, 2
      // Predicated region
      $region25: #{tpu_custom_call.1} parent=5 // pred_check
        %p164 = pneg %p163
      $region26: #{tpu_custom_call.1} parent=5 // pred_check_branch
        %166 = sbr.rel (%p164) target = $region28
      $region27: #{tpu_custom_call.1} parent=5 // pred_region
        // Predicated region
        $region29: #{tpu_custom_call.1} parent=27 // pred_check
          %p167 = pneg %p34
        $region30: #{tpu_custom_call.1} parent=27 // pred_check_branch
          %169 = sbr.rel (%p167) target = $region32
        $region31: #{tpu_custom_call.1} parent=27 // pred_region
          %s170 = smul.u32 4, %s14
          %p171 = scmp.lt.s32.totalorder %s170, 7
          %s172 = scalar_select %p171, %s170, 7
          %s173 = smul.addr %s172, 8
          %s174 = scalar_lea.vmem %s0, %s173
          %s175 = smul.u32 4, %s14
        $region32: #{tpu_custom_call.1} parent=27 // pred_fallthru
          _
      $region28: #{tpu_custom_call.1} parent=5 // pred_fallthru
        _
      %p176 = scmp.le.s32.totalorder 1, %s14
      %p177 = scmp.lt.s32.totalorder %s14, 3
      %p178 = pnand %p176, %p177
      %p179 = pneg %p178
      // Predicated region
      $region33: #{tpu_custom_call.1} parent=5 // pred_check
        _
      $region34: #{tpu_custom_call.1} parent=5 // pred_check_branch
        %181 = sbr.rel (%p178) target = $region36
      $region35: #{tpu_custom_call.1} parent=5 // pred_region
        %s182 = ssub.s32 %s14, 1
        // Predicated region
        $region37: #{tpu_custom_call.1} parent=35 // pred_check
          %p183 = pneg %p61
        $region38: #{tpu_custom_call.1} parent=35 // pred_check_branch
          %185 = sbr.rel (%p183) target = $region40
        $region39: #{tpu_custom_call.1} parent=35 // pred_region
          %186 = dma.done [#allocation4], 6144
        $region40: #{tpu_custom_call.1} parent=35 // pred_fallthru
          _
        %s187 = smul.u32 4, %s19
        %p188 = scmp.lt.s32.totalorder %s187, 7
        %s189 = scalar_select %p188, %s187, 7
        %s190 = smul.addr %s189, 8
        %s191 = scalar_lea.vmem %s0, %s190
        %p192 = pneg %p40
        %p193 = pneg %p37
        %p194 = pneg %p61
        %p195 = pneg %p58
        %p196 = pneg %p82
        %p197 = pneg %p79
        %p198 = pneg %p103
        %p199 = pneg %p100
        %p200 = pneg %p129
        %p201 = pneg %p126
        %s202 = sand.u32 %s116, 1
        %s203 = scalar_lea.sflag [#allocation5], %s202
        %s204 = sand.u32 %s116, 1
        %s205 = smul.addr %s204, 128
        %s206 = scalar_lea.vmem [#allocation6], %s205
        %s207 = smul.u32 4, %s19
        %p208 = scmp.lt.s32.totalorder %s207, 7
        %s209 = scalar_select %p208, %s207, 7
        %s210 = smul.addr %s209, 8
        %s211 = scalar_lea.vmem %s0, %s210
        %s212 = smul.u32 4, %s19
        %s213 = smul.u32 4, %s19
        %v214 = vld [vmem:[%s211] sm:$0xff]
        %v215 = vld [vmem:[%s211 + $0x8] sm:$0xff]
        %v216 = vld [vmem:[%s211 + $0x10] sm:$0xff]
        %v217 = vld [vmem:[%s211 + $0x18] sm:$0xff]
        %v218 = vld [vmem:[#allocation3] sm:$0xff]
        %v219 = vld [vmem:[#allocation3 + $0x8] sm:$0xff]
        %v220 = vld [vmem:[#allocation3 + $0x10] sm:$0xff]
        %v221 = vld [vmem:[#allocation3 + $0x18] sm:$0xff]
        %v222 = vld [vmem:[#allocation3 + $0x20] sm:$0xff]
        %v223 = vld [vmem:[#allocation3 + $0x28] sm:$0xff]
        %v224 = vld [vmem:[#allocation3 + $0x30] sm:$0xff]
        %v225 = vld [vmem:[#allocation3 + $0x38] sm:$0xff]
        %v226 = vld [vmem:[#allocation3 + $0x40] sm:$0xff]
        %v227 = vld [vmem:[#allocation3 + $0x48] sm:$0xff]
        %v228 = vld [vmem:[#allocation3 + $0x50] sm:$0xff]
        %v229 = vld [vmem:[#allocation3 + $0x58] sm:$0xff]
        %v230 = vld [vmem:[#allocation3 + $0x60] sm:$0xff]
        %v231 = vld [vmem:[#allocation3 + $0x68] sm:$0xff]
        %v232 = vld [vmem:[#allocation3 + $0x70] sm:$0xff]
        %v233 = vld [vmem:[#allocation3 + $0x78] sm:$0xff]
        %234 = vmatprep.subr.mxu0 0.0
        %235 = vmatpush1.msra.mxu0 %v233
        %236 = vmatprep.subr.mxu0 0.0
        %237 = vmatpush1.msra.mxu0 %v232
        %238 = vmatprep.subr.mxu0 0.0
        %239 = vmatpush1.msra.mxu0 %v231
        %240 = vmatprep.subr.mxu0 0.0
        %241 = vmatpush1.msra.mxu0 %v230
        %242 = vmatprep.subr.mxu0 0.0
        %243 = vmatpush1.msra.mxu0 %v229
        %244 = vmatprep.subr.mxu0 0.0
        %245 = vmatpush1.msra.mxu0 %v228
        %246 = vmatprep.subr.mxu0 0.0
        %247 = vmatpush1.msra.mxu0 %v227
        %248 = vmatprep.subr.mxu0 0.0
        %249 = vmatpush1.msra.mxu0 %v226
        %250 = vmatprep.subr.mxu0 0.0
        %251 = vmatpush1.msra.mxu0 %v225
        %252 = vmatprep.subr.mxu0 0.0
        %253 = vmatpush1.msra.mxu0 %v224
        %254 = vmatprep.subr.mxu0 0.0
        %255 = vmatpush1.msra.mxu0 %v223
        %256 = vmatprep.subr.mxu0 0.0
        %257 = vmatpush1.msra.mxu0 %v222
        %258 = vmatprep.subr.mxu0 0.0
        %259 = vmatpush1.msra.mxu0 %v221
        %260 = vmatprep.subr.mxu0 0.0
        %261 = vmatpush1.msra.mxu0 %v220
        %262 = vmatprep.subr.mxu0 0.0
        %263 = vmatpush1.msra.mxu0 %v219
        %264 = vmatprep.subr.mxu0 0.0
        %265 = vmatpush1.msra.mxu0 %v218
        %266 = vmatprep.subr.mxu0 0.0
        %267 = vmatpush2.msra.mxu0 0.0
        %268 = vmatprep.subr.mxu0 0.0
        %269 = vmatpush2.msra.mxu0 0.0
        %270 = vmatprep.subr.mxu0 0.0
        %271 = vmatpush2.msra.mxu0 0.0
        %272 = vmatprep.subr.mxu0 0.0
        %273 = vmatpush2.msra.mxu0 0.0
        %274 = vmatprep.subr.mxu0 0.0
        %275 = vmatpush2.msra.mxu0 0.0
        %276 = vmatprep.subr.mxu0 0.0
        %277 = vmatpush2.msra.mxu0 0.0
        %278 = vmatprep.subr.mxu0 0.0
        %279 = vmatpush2.msra.mxu0 0.0
        %280 = vmatprep.subr.mxu0 0.0
        %281 = vmatpush2.msra.mxu0 0.0
        %282 = vmatprep.subr.mxu0 0.0
        %283 = vmatpush2.msra.mxu0 0.0
        %284 = vmatprep.subr.mxu0 0.0
        %285 = vmatpush2.msra.mxu0 0.0
        %286 = vmatprep.subr.mxu0 0.0
        %287 = vmatpush2.msra.mxu0 0.0
        %288 = vmatprep.subr.mxu0 0.0
        %289 = vmatpush2.msra.mxu0 0.0
        %290 = vmatprep.subr.mxu0 0.0
        %291 = vmatpush2.msra.mxu0 0.0
        %292 = vmatprep.subr.mxu0 0.0
        %293 = vmatpush2.msra.mxu0 0.0
        %294 = vmatprep.subr.mxu0 0.0
        %295 = vmatpush2.msra.mxu0 0.0
        %296 = vmatprep.subr.mxu0 0.0
        %297 = vmatpush2.msra.mxu0 0.0
        %298 = vmatprep.mubr.f32.mxu0 0.0
        %299 = vmatmul.mubr.f32.gmra.mxu0 %v214
        %v300 = vpop.f32.mrf.mxu0
        %v301 = vadd.f32 0.0, %v300
        %v302 = vpop.f32.mrf.mxu0
        %303 = vmatprep.mubr.f32.mxu0 0.0
        %304 = vmatmul.mubr.f32.gmra.mxu0 %v215
        %v305 = vpop.f32.mrf.mxu0
        %v306 = vadd.f32 0.0, %v305
        %v307 = vpop.f32.mrf.mxu0
        %308 = vmatprep.mubr.f32.mxu0 0.0
        %309 = vmatmul.mubr.f32.gmra.mxu0 %v216
        %v310 = vpop.f32.mrf.mxu0
        %v311 = vadd.f32 0.0, %v310
        %v312 = vpop.f32.mrf.mxu0
        %313 = vmatprep.mubr.f32.mxu0 0.0
        %314 = vmatmul.mubr.f32.gmra.mxu0 %v217
        %v315 = vpop.f32.mrf.mxu0
        %v316 = vadd.f32 0.0, %v315
        %v317 = vpop.f32.mrf.mxu0
        %318 = vdwg.mxu0
        %319 = vst [vmem:[#allocation2] sm:$0xff] %v301
        %320 = vst [vmem:[#allocation2 + $0x18] sm:$0xff] %v306
        %321 = vst [vmem:[#allocation2 + $0x30] sm:$0xff] %v311
        %322 = vst [vmem:[#allocation2 + $0x48] sm:$0xff] %v316
        %s323 = scalar_lea.vmem [#allocation3], 128
        %v324 = vld [vmem:[%s323] sm:$0xff]
        %v325 = vld [vmem:[%s323 + $0x8] sm:$0xff]
        %v326 = vld [vmem:[%s323 + $0x10] sm:$0xff]
        %v327 = vld [vmem:[%s323 + $0x18] sm:$0xff]
        %v328 = vld [vmem:[%s323 + $0x20] sm:$0xff]
        %v329 = vld [vmem:[%s323 + $0x28] sm:$0xff]
        %v330 = vld [vmem:[%s323 + $0x30] sm:$0xff]
        %v331 = vld [vmem:[%s323 + $0x38] sm:$0xff]
        %v332 = vld [vmem:[%s323 + $0x40] sm:$0xff]
        %v333 = vld [vmem:[%s323 + $0x48] sm:$0xff]
        %v334 = vld [vmem:[%s323 + $0x50] sm:$0xff]
        %v335 = vld [vmem:[%s323 + $0x58] sm:$0xff]
        %v336 = vld [vmem:[%s323 + $0x60] sm:$0xff]
        %v337 = vld [vmem:[%s323 + $0x68] sm:$0xff]
        %v338 = vld [vmem:[%s323 + $0x70] sm:$0xff]
        %v339 = vld [vmem:[%s323 + $0x78] sm:$0xff]
        %340 = vmatprep.subr.mxu0 0.0
        %341 = vmatpush1.msra.mxu0 %v339
        %342 = vmatprep.subr.mxu0 0.0
        %343 = vmatpush1.msra.mxu0 %v338
        %344 = vmatprep.subr.mxu0 0.0
        %345 = vmatpush1.msra.mxu0 %v337
        %346 = vmatprep.subr.mxu0 0.0
        %347 = vmatpush1.msra.mxu0 %v336
        %348 = vmatprep.subr.mxu0 0.0
        %349 = vmatpush1.msra.mxu0 %v335
        %350 = vmatprep.subr.mxu0 0.0
        %351 = vmatpush1.msra.mxu0 %v334
        %352 = vmatprep.subr.mxu0 0.0
        %353 = vmatpush1.msra.mxu0 %v333
        %354 = vmatprep.subr.mxu0 0.0
        %355 = vmatpush1.msra.mxu0 %v332
        %356 = vmatprep.subr.mxu0 0.0
        %357 = vmatpush1.msra.mxu0 %v331
        %358 = vmatprep.subr.mxu0 0.0
        %359 = vmatpush1.msra.mxu0 %v330
        %360 = vmatprep.subr.mxu0 0.0
        %361 = vmatpush1.msra.mxu0 %v329
        %362 = vmatprep.subr.mxu0 0.0
        %363 = vmatpush1.msra.mxu0 %v328
        %364 = vmatprep.subr.mxu0 0.0
        %365 = vmatpush1.msra.mxu0 %v327
        %366 = vmatprep.subr.mxu0 0.0
        %367 = vmatpush1.msra.mxu0 %v326
        %368 = vmatprep.subr.mxu0 0.0
        %369 = vmatpush1.msra.mxu0 %v325
        %370 = vmatprep.subr.mxu0 0.0
        %371 = vmatpush1.msra.mxu0 %v324
        %372 = vmatprep.subr.mxu0 0.0
        %373 = vmatpush2.msra.mxu0 0.0
        %374 = vmatprep.subr.mxu0 0.0
        %375 = vmatpush2.msra.mxu0 0.0
        %376 = vmatprep.subr.mxu0 0.0
        %377 = vmatpush2.msra.mxu0 0.0
        %378 = vmatprep.subr.mxu0 0.0
        %379 = vmatpush2.msra.mxu0 0.0
        %380 = vmatprep.subr.mxu0 0.0
        %381 = vmatpush2.msra.mxu0 0.0
        %382 = vmatprep.subr.mxu0 0.0
        %383 = vmatpush2.msra.mxu0 0.0
        %384 = vmatprep.subr.mxu0 0.0
        %385 = vmatpush2.msra.mxu0 0.0
        %386 = vmatprep.subr.mxu0 0.0
        %387 = vmatpush2.msra.mxu0 0.0
        %388 = vmatprep.subr.mxu0 0.0
        %389 = vmatpush2.msra.mxu0 0.0
        %390 = vmatprep.subr.mxu0 0.0
        %391 = vmatpush2.msra.mxu0 0.0
        %392 = vmatprep.subr.mxu0 0.0
        %393 = vmatpush2.msra.mxu0 0.0
        %394 = vmatprep.subr.mxu0 0.0
        %395 = vmatpush2.msra.mxu0 0.0
        %396 = vmatprep.subr.mxu0 0.0
        %397 = vmatpush2.msra.mxu0 0.0
        %398 = vmatprep.subr.mxu0 0.0
        %399 = vmatpush2.msra.mxu0 0.0
        %400 = vmatprep.subr.mxu0 0.0
        %401 = vmatpush2.msra.mxu0 0.0
        %402 = vmatprep.subr.mxu0 0.0
        %403 = vmatpush2.msra.mxu0 0.0
        %404 = vmatprep.mubr.f32.mxu0 0.0
        %405 = vmatmul.mubr.f32.gmra.mxu0 %v214
        %v406 = vpop.f32.mrf.mxu0
        %v407 = vadd.f32 0.0, %v406
        %v408 = vpop.f32.mrf.mxu0
        %409 = vmatprep.mubr.f32.mxu0 0.0
        %410 = vmatmul.mubr.f32.gmra.mxu0 %v215
        %v411 = vpop.f32.mrf.mxu0
        %v412 = vadd.f32 0.0, %v411
        %v413 = vpop.f32.mrf.mxu0
        %414 = vmatprep.mubr.f32.mxu0 0.0
        %415 = vmatmul.mubr.f32.gmra.mxu0 %v216
        %v416 = vpop.f32.mrf.mxu0
        %v417 = vadd.f32 0.0, %v416
        %v418 = vpop.f32.mrf.mxu0
        %419 = vmatprep.mubr.f32.mxu0 0.0
        %420 = vmatmul.mubr.f32.gmra.mxu0 %v217
        %v421 = vpop.f32.mrf.mxu0
        %v422 = vadd.f32 0.0, %v421
        %v423 = vpop.f32.mrf.mxu0
        %424 = vdwg.mxu0
        %425 = vst [vmem:[#allocation2 + $0x8] sm:$0xff] %v407
        %426 = vst [vmem:[#allocation2 + $0x20] sm:$0xff] %v412
        %427 = vst [vmem:[#allocation2 + $0x38] sm:$0xff] %v417
        %428 = vst [vmem:[#allocation2 + $0x50] sm:$0xff] %v422
        %s429 = scalar_lea.vmem [#allocation3], 256
        %v430 = vld [vmem:[%s429] sm:$0xff]
        %v431 = vld [vmem:[%s429 + $0x8] sm:$0xff]
        %v432 = vld [vmem:[%s429 + $0x10] sm:$0xff]
        %v433 = vld [vmem:[%s429 + $0x18] sm:$0xff]
        %v434 = vld [vmem:[%s429 + $0x20] sm:$0xff]
        %v435 = vld [vmem:[%s429 + $0x28] sm:$0xff]
        %v436 = vld [vmem:[%s429 + $0x30] sm:$0xff]
        %v437 = vld [vmem:[%s429 + $0x38] sm:$0xff]
        %v438 = vld [vmem:[%s429 + $0x40] sm:$0xff]
        %v439 = vld [vmem:[%s429 + $0x48] sm:$0xff]
        %v440 = vld [vmem:[%s429 + $0x50] sm:$0xff]
        %v441 = vld [vmem:[%s429 + $0x58] sm:$0xff]
        %v442 = vld [vmem:[%s429 + $0x60] sm:$0xff]
        %v443 = vld [vmem:[%s429 + $0x68] sm:$0xff]
        %v444 = vld [vmem:[%s429 + $0x70] sm:$0xff]
        %v445 = vld [vmem:[%s429 + $0x78] sm:$0xff]
        %446 = vmatprep.subr.mxu0 0.0
        %447 = vmatpush1.msra.mxu0 %v445
        %448 = vmatprep.subr.mxu0 0.0
        %449 = vmatpush1.msra.mxu0 %v444
        %450 = vmatprep.subr.mxu0 0.0
        %451 = vmatpush1.msra.mxu0 %v443
        %452 = vmatprep.subr.mxu0 0.0
        %453 = vmatpush1.msra.mxu0 %v442
        %454 = vmatprep.subr.mxu0 0.0
        %455 = vmatpush1.msra.mxu0 %v441
        %456 = vmatprep.subr.mxu0 0.0
        %457 = vmatpush1.msra.mxu0 %v440
        %458 = vmatprep.subr.mxu0 0.0
        %459 = vmatpush1.msra.mxu0 %v439
        %460 = vmatprep.subr.mxu0 0.0
        %461 = vmatpush1.msra.mxu0 %v438
        %462 = vmatprep.subr.mxu0 0.0
        %463 = vmatpush1.msra.mxu0 %v437
        %464 = vmatprep.subr.mxu0 0.0
        %465 = vmatpush1.msra.mxu0 %v436
        %466 = vmatprep.subr.mxu0 0.0
        %467 = vmatpush1.msra.mxu0 %v435
        %468 = vmatprep.subr.mxu0 0.0
        %469 = vmatpush1.msra.mxu0 %v434
        %470 = vmatprep.subr.mxu0 0.0
        %471 = vmatpush1.msra.mxu0 %v433
        %472 = vmatprep.subr.mxu0 0.0
        %473 = vmatpush1.msra.mxu0 %v432
        %474 = vmatprep.subr.mxu0 0.0
        %475 = vmatpush1.msra.mxu0 %v431
        %476 = vmatprep.subr.mxu0 0.0
        %477 = vmatpush1.msra.mxu0 %v430
        %478 = vmatprep.subr.mxu0 0.0
        %479 = vmatpush2.msra.mxu0 0.0
        %480 = vmatprep.subr.mxu0 0.0
        %481 = vmatpush2.msra.mxu0 0.0
        %482 = vmatprep.subr.mxu0 0.0
        %483 = vmatpush2.msra.mxu0 0.0
        %484 = vmatprep.subr.mxu0 0.0
        %485 = vmatpush2.msra.mxu0 0.0
        %486 = vmatprep.subr.mxu0 0.0
        %487 = vmatpush2.msra.mxu0 0.0
        %488 = vmatprep.subr.mxu0 0.0
        %489 = vmatpush2.msra.mxu0 0.0
        %490 = vmatprep.subr.mxu0 0.0
        %491 = vmatpush2.msra.mxu0 0.0
        %492 = vmatprep.subr.mxu0 0.0
        %493 = vmatpush2.msra.mxu0 0.0
        %494 = vmatprep.subr.mxu0 0.0
        %495 = vmatpush2.msra.mxu0 0.0
        %496 = vmatprep.subr.mxu0 0.0
        %497 = vmatpush2.msra.mxu0 0.0
        %498 = vmatprep.subr.mxu0 0.0
        %499 = vmatpush2.msra.mxu0 0.0
        %500 = vmatprep.subr.mxu0 0.0
        %501 = vmatpush2.msra.mxu0 0.0
        %502 = vmatprep.subr.mxu0 0.0
        %503 = vmatpush2.msra.mxu0 0.0
        %504 = vmatprep.subr.mxu0 0.0
        %505 = vmatpush2.msra.mxu0 0.0
        %506 = vmatprep.subr.mxu0 0.0
        %507 = vmatpush2.msra.mxu0 0.0
        %508 = vmatprep.subr.mxu0 0.0
        %509 = vmatpush2.msra.mxu0 0.0
        %510 = vmatprep.mubr.f32.mxu0 0.0
        %511 = vmatmul.mubr.f32.gmra.mxu0 %v214
        %v512 = vpop.f32.mrf.mxu0
        %v513 = vadd.f32 0.0, %v512
        %v514 = vpop.f32.mrf.mxu0
        %515 = vmatprep.mubr.f32.mxu0 0.0
        %516 = vmatmul.mubr.f32.gmra.mxu0 %v215
        %v517 = vpop.f32.mrf.mxu0
        %v518 = vadd.f32 0.0, %v517
        %v519 = vpop.f32.mrf.mxu0
        %520 = vmatprep.mubr.f32.mxu0 0.0
        %521 = vmatmul.mubr.f32.gmra.mxu0 %v216
        %v522 = vpop.f32.mrf.mxu0
        %v523 = vadd.f32 0.0, %v522
        %v524 = vpop.f32.mrf.mxu0
        %525 = vmatprep.mubr.f32.mxu0 0.0
        %526 = vmatmul.mubr.f32.gmra.mxu0 %v217
        %v527 = vpop.f32.mrf.mxu0
        %v528 = vadd.f32 0.0, %v527
        %v529 = vpop.f32.mrf.mxu0
        %530 = vdwg.mxu0
        %531 = vst [vmem:[#allocation2 + $0x10] sm:$0xff] %v513
        %532 = vst [vmem:[#allocation2 + $0x28] sm:$0xff] %v518
        %533 = vst [vmem:[#allocation2 + $0x40] sm:$0xff] %v523
        %534 = vst [vmem:[#allocation2 + $0x58] sm:$0xff] %v528
        %v535 = vld [vmem:[%s2] sm:$0xff]
        %v536 = vld [vmem:[%s2 + $0x8] sm:$0xff]
        %v537 = vld [vmem:[%s2 + $0x10] sm:$0xff]
        %v538 = vld [vmem:[%s2 + $0x18] sm:$0xff]
        %v539 = vld [vmem:[%s3] sm:$0xff]
        %v540 = vld [vmem:[%s3 + $0x8] sm:$0xff]
        %v541 = vld [vmem:[%s3 + $0x10] sm:$0xff]
        %v542 = vld [vmem:[%s3 + $0x18] sm:$0xff]
        %544 = vset.pattern.permute.xlu0 0
        %545 = vperm.xlu0 %544, %v539
        %v546 = vpop.permute.xlu0 %545
        %549 = vset.pattern.permute.xlu0 0
        %550 = vperm.xlu0 %549, %v540
        %v551 = vpop.permute.xlu0 %550
        %554 = vset.pattern.permute.xlu0 0
        %555 = vperm.xlu0 %554, %v541
        %v556 = vpop.permute.xlu0 %555
        %559 = vset.pattern.permute.xlu0 0
        %560 = vperm.xlu0 %559, %v542
        %v561 = vpop.permute.xlu0 %560
        %v563 = vld [vmem:[#allocation2] sm:$0xff]
        %v564 = vld [vmem:[#allocation2 + $0x8] sm:$0xff]
        %v565 = vld [vmem:[#allocation2 + $0x10] sm:$0xff]
        %vm566 = vcmask 195584
        %v568 = vsel %vm566, %v535, 0
        %v571 = vsel %vm566, %v536, 0
        %v574 = vsel %vm566, %v537, 0
        %v577 = vsel %vm566, %v538, 0
        %579 = vmatprep.subr.mxu0 0.0
        %580 = vmatpush1.msra.mxu0 0.0
        %581 = vmatprep.subr.mxu0 0.0
        %582 = vmatpush1.msra.mxu0 0.0
        %583 = vmatprep.subr.mxu0 0.0
        %584 = vmatpush1.msra.mxu0 0.0
        %585 = vmatprep.subr.mxu0 0.0
        %586 = vmatpush1.msra.mxu0 0.0
        %587 = vmatprep.subr.mxu0 0.0
        %588 = vmatpush1.msra.mxu0 0.0
        %589 = vmatprep.subr.mxu0 0.0
        %590 = vmatpush1.msra.mxu0 0.0
        %591 = vmatprep.subr.mxu0 0.0
        %592 = vmatpush1.msra.mxu0 0.0
        %593 = vmatprep.subr.mxu0 0.0
        %594 = vmatpush1.msra.mxu0 0.0
        %595 = vmatprep.subr.mxu0 0.0
        %596 = vmatpush1.msra.mxu0 0.0
        %597 = vmatprep.subr.mxu0 0.0
        %598 = vmatpush1.msra.mxu0 0.0
        %599 = vmatprep.subr.mxu0 0.0
        %600 = vmatpush1.msra.mxu0 0.0
        %601 = vmatprep.subr.mxu0 0.0
        %602 = vmatpush1.msra.mxu0 0.0
        %603 = vmatprep.subr.mxu0 0.0
        %604 = vmatpush1.msra.mxu0 0.0
        %605 = vmatprep.subr.mxu0 0.0
        %606 = vmatpush1.msra.mxu0 %v565
        %607 = vmatprep.subr.mxu0 0.0
        %608 = vmatpush1.msra.mxu0 %v564
        %609 = vmatprep.subr.mxu0 0.0
        %610 = vmatpush1.msra.mxu0 %v563
        %611 = vmatprep.subr.mxu0 0.0
        %612 = vmatpush2.msra.mxu0 0.0
        %613 = vmatprep.subr.mxu0 0.0
        %614 = vmatpush2.msra.mxu0 0.0
        %615 = vmatprep.subr.mxu0 0.0
        %616 = vmatpush2.msra.mxu0 0.0
        %617 = vmatprep.subr.mxu0 0.0
        %618 = vmatpush2.msra.mxu0 0.0
        %619 = vmatprep.subr.mxu0 0.0
        %620 = vmatpush2.msra.mxu0 0.0
        %621 = vmatprep.subr.mxu0 0.0
        %622 = vmatpush2.msra.mxu0 0.0
        %623 = vmatprep.subr.mxu0 0.0
        %624 = vmatpush2.msra.mxu0 0.0
        %625 = vmatprep.subr.mxu0 0.0
        %626 = vmatpush2.msra.mxu0 0.0
        %627 = vmatprep.subr.mxu0 0.0
        %628 = vmatpush2.msra.mxu0 0.0
        %629 = vmatprep.subr.mxu0 0.0
        %630 = vmatpush2.msra.mxu0 0.0
        %631 = vmatprep.subr.mxu0 0.0
        %632 = vmatpush2.msra.mxu0 0.0
        %633 = vmatprep.subr.mxu0 0.0
        %634 = vmatpush2.msra.mxu0 0.0
        %635 = vmatprep.subr.mxu0 0.0
        %636 = vmatpush2.msra.mxu0 0.0
        %637 = vmatprep.subr.mxu0 0.0
        %638 = vmatpush2.msra.mxu0 0.0
        %639 = vmatprep.subr.mxu0 0.0
        %640 = vmatpush2.msra.mxu0 0.0
        %641 = vmatprep.subr.mxu0 0.0
        %642 = vmatpush2.msra.mxu0 0.0
        %643 = vmatprep.mubr.f32.mxu0 0.0
        %644 = vmatmul.mubr.f32.gmra.mxu0 %v568
        %v645 = vpop.f32.mrf.mxu0
        %v646 = vadd.f32 0.0, %v645
        %v647 = vpop.f32.mrf.mxu0
        %648 = vmatprep.mubr.f32.mxu0 0.0
        %649 = vmatmul.mubr.f32.gmra.mxu0 %v571
        %v650 = vpop.f32.mrf.mxu0
        %v651 = vadd.f32 0.0, %v650
        %v652 = vpop.f32.mrf.mxu0
        %653 = vmatprep.mubr.f32.mxu0 0.0
        %654 = vmatmul.mubr.f32.gmra.mxu0 %v574
        %v655 = vpop.f32.mrf.mxu0
        %v656 = vadd.f32 0.0, %v655
        %v657 = vpop.f32.mrf.mxu0
        %658 = vmatprep.mubr.f32.mxu0 0.0
        %659 = vmatmul.mubr.f32.gmra.mxu0 %v577
        %v660 = vpop.f32.mrf.mxu0
        %v661 = vadd.f32 0.0, %v660
        %v662 = vpop.f32.mrf.mxu0
        %663 = vdwg.mxu0
        %v664 = vadd.f32 %v546, %v646
        %v665 = vadd.f32 %v551, %v651
        %v666 = vadd.f32 %v556, %v656
        %v667 = vadd.f32 %v561, %v661
        %668 = vst [vmem:[%s206] sm:$0xff] %v664
        %669 = vst [vmem:[%s206 + $0x8] sm:$0xff] %v665
        %670 = vst [vmem:[%s206 + $0x10] sm:$0xff] %v666
        %671 = vst [vmem:[%s206 + $0x18] sm:$0xff] %v667
        %s672 = scalar_lea.vmem [#allocation2], 24
        %v673 = vld [vmem:[%s672] sm:$0xff]
        %v674 = vld [vmem:[%s672 + $0x8] sm:$0xff]
        %v675 = vld [vmem:[%s672 + $0x10] sm:$0xff]
        %676 = vmatprep.subr.mxu0 0.0
        %677 = vmatpush1.msra.mxu0 0.0
        %678 = vmatprep.subr.mxu0 0.0
        %679 = vmatpush1.msra.mxu0 0.0
        %680 = vmatprep.subr.mxu0 0.0
        %681 = vmatpush1.msra.mxu0 0.0
        %682 = vmatprep.subr.mxu0 0.0
        %683 = vmatpush1.msra.mxu0 0.0
        %684 = vmatprep.subr.mxu0 0.0
        %685 = vmatpush1.msra.mxu0 0.0
        %686 = vmatprep.subr.mxu0 0.0
        %687 = vmatpush1.msra.mxu0 0.0
        %688 = vmatprep.subr.mxu0 0.0
        %689 = vmatpush1.msra.mxu0 0.0
        %690 = vmatprep.subr.mxu0 0.0
        %691 = vmatpush1.msra.mxu0 0.0
        %692 = vmatprep.subr.mxu0 0.0
        %693 = vmatpush1.msra.mxu0 0.0
        %694 = vmatprep.subr.mxu0 0.0
        %695 = vmatpush1.msra.mxu0 0.0
        %696 = vmatprep.subr.mxu0 0.0
        %697 = vmatpush1.msra.mxu0 0.0
        %698 = vmatprep.subr.mxu0 0.0
        %699 = vmatpush1.msra.mxu0 0.0
        %700 = vmatprep.subr.mxu0 0.0
        %701 = vmatpush1.msra.mxu0 0.0
        %702 = vmatprep.subr.mxu0 0.0
        %703 = vmatpush1.msra.mxu0 %v675
        %704 = vmatprep.subr.mxu0 0.0
        %705 = vmatpush1.msra.mxu0 %v674
        %706 = vmatprep.subr.mxu0 0.0
        %707 = vmatpush1.msra.mxu0 %v673
        %708 = vmatprep.subr.mxu0 0.0
        %709 = vmatpush2.msra.mxu0 0.0
        %710 = vmatprep.subr.mxu0 0.0
        %711 = vmatpush2.msra.mxu0 0.0
        %712 = vmatprep.subr.mxu0 0.0
        %713 = vmatpush2.msra.mxu0 0.0
        %714 = vmatprep.subr.mxu0 0.0
        %715 = vmatpush2.msra.mxu0 0.0
        %716 = vmatprep.subr.mxu0 0.0
        %717 = vmatpush2.msra.mxu0 0.0
        %718 = vmatprep.subr.mxu0 0.0
        %719 = vmatpush2.msra.mxu0 0.0
        %720 = vmatprep.subr.mxu0 0.0
        %721 = vmatpush2.msra.mxu0 0.0
        %722 = vmatprep.subr.mxu0 0.0
        %723 = vmatpush2.msra.mxu0 0.0
        %724 = vmatprep.subr.mxu0 0.0
        %725 = vmatpush2.msra.mxu0 0.0
        %726 = vmatprep.subr.mxu0 0.0
        %727 = vmatpush2.msra.mxu0 0.0
        %728 = vmatprep.subr.mxu0 0.0
        %729 = vmatpush2.msra.mxu0 0.0
        %730 = vmatprep.subr.mxu0 0.0
        %731 = vmatpush2.msra.mxu0 0.0
        %732 = vmatprep.subr.mxu0 0.0
        %733 = vmatpush2.msra.mxu0 0.0
        %734 = vmatprep.subr.mxu0 0.0
        %735 = vmatpush2.msra.mxu0 0.0
        %736 = vmatprep.subr.mxu0 0.0
        %737 = vmatpush2.msra.mxu0 0.0
        %738 = vmatprep.subr.mxu0 0.0
        %739 = vmatpush2.msra.mxu0 0.0
        %740 = vmatprep.mubr.f32.mxu0 0.0
        %741 = vmatmul.mubr.f32.gmra.mxu0 %v568
        %v742 = vpop.f32.mrf.mxu0
        %v743 = vadd.f32 0.0, %v742
        %v744 = vpop.f32.mrf.mxu0
        %745 = vmatprep.mubr.f32.mxu0 0.0
        %746 = vmatmul.mubr.f32.gmra.mxu0 %v571
        %v747 = vpop.f32.mrf.mxu0
        %v748 = vadd.f32 0.0, %v747
        %v749 = vpop.f32.mrf.mxu0
        %750 = vmatprep.mubr.f32.mxu0 0.0
        %751 = vmatmul.mubr.f32.gmra.mxu0 %v574
        %v752 = vpop.f32.mrf.mxu0
        %v753 = vadd.f32 0.0, %v752
        %v754 = vpop.f32.mrf.mxu0
        %755 = vmatprep.mubr.f32.mxu0 0.0
        %756 = vmatmul.mubr.f32.gmra.mxu0 %v577
        %v757 = vpop.f32.mrf.mxu0
        %v758 = vadd.f32 0.0, %v757
        %v759 = vpop.f32.mrf.mxu0
        %760 = vdwg.mxu0
        %v761 = vadd.f32 %v546, %v743
        %v762 = vadd.f32 %v551, %v748
        %v763 = vadd.f32 %v556, %v753
        %v764 = vadd.f32 %v561, %v758
        %s765 = scalar_lea.vmem %s206, 32 [#allocation6]
        %766 = vst [vmem:[%s765] sm:$0xff] %v761
        %767 = vst [vmem:[%s765 + $0x8] sm:$0xff] %v762
        %768 = vst [vmem:[%s765 + $0x10] sm:$0xff] %v763
        %769 = vst [vmem:[%s765 + $0x18] sm:$0xff] %v764
        %s770 = scalar_lea.vmem [#allocation2], 48
        %v771 = vld [vmem:[%s770] sm:$0xff]
        %v772 = vld [vmem:[%s770 + $0x8] sm:$0xff]
        %v773 = vld [vmem:[%s770 + $0x10] sm:$0xff]
        %774 = vmatprep.subr.mxu0 0.0
        %775 = vmatpush1.msra.mxu0 0.0
        %776 = vmatprep.subr.mxu0 0.0
        %777 = vmatpush1.msra.mxu0 0.0
        %778 = vmatprep.subr.mxu0 0.0
        %779 = vmatpush1.msra.mxu0 0.0
        %780 = vmatprep.subr.mxu0 0.0
        %781 = vmatpush1.msra.mxu0 0.0
        %782 = vmatprep.subr.mxu0 0.0
        %783 = vmatpush1.msra.mxu0 0.0
        %784 = vmatprep.subr.mxu0 0.0
        %785 = vmatpush1.msra.mxu0 0.0
        %786 = vmatprep.subr.mxu0 0.0
        %787 = vmatpush1.msra.mxu0 0.0
        %788 = vmatprep.subr.mxu0 0.0
        %789 = vmatpush1.msra.mxu0 0.0
        %790 = vmatprep.subr.mxu0 0.0
        %791 = vmatpush1.msra.mxu0 0.0
        %792 = vmatprep.subr.mxu0 0.0
        %793 = vmatpush1.msra.mxu0 0.0
        %794 = vmatprep.subr.mxu0 0.0
        %795 = vmatpush1.msra.mxu0 0.0
        %796 = vmatprep.subr.mxu0 0.0
        %797 = vmatpush1.msra.mxu0 0.0
        %798 = vmatprep.subr.mxu0 0.0
        %799 = vmatpush1.msra.mxu0 0.0
        %800 = vmatprep.subr.mxu0 0.0
        %801 = vmatpush1.msra.mxu0 %v773
        %802 = vmatprep.subr.mxu0 0.0
        %803 = vmatpush1.msra.mxu0 %v772
        %804 = vmatprep.subr.mxu0 0.0
        %805 = vmatpush1.msra.mxu0 %v771
        %806 = vmatprep.subr.mxu0 0.0
        %807 = vmatpush2.msra.mxu0 0.0
        %808 = vmatprep.subr.mxu0 0.0
        %809 = vmatpush2.msra.mxu0 0.0
        %810 = vmatprep.subr.mxu0 0.0
        %811 = vmatpush2.msra.mxu0 0.0
        %812 = vmatprep.subr.mxu0 0.0
        %813 = vmatpush2.msra.mxu0 0.0
        %814 = vmatprep.subr.mxu0 0.0
        %815 = vmatpush2.msra.mxu0 0.0
        %816 = vmatprep.subr.mxu0 0.0
        %817 = vmatpush2.msra.mxu0 0.0
        %818 = vmatprep.subr.mxu0 0.0
        %819 = vmatpush2.msra.mxu0 0.0
        %820 = vmatprep.subr.mxu0 0.0
        %821 = vmatpush2.msra.mxu0 0.0
        %822 = vmatprep.subr.mxu0 0.0
        %823 = vmatpush2.msra.mxu0 0.0
        %824 = vmatprep.subr.mxu0 0.0
        %825 = vmatpush2.msra.mxu0 0.0
        %826 = vmatprep.subr.mxu0 0.0
        %827 = vmatpush2.msra.mxu0 0.0
        %828 = vmatprep.subr.mxu0 0.0
        %829 = vmatpush2.msra.mxu0 0.0
        %830 = vmatprep.subr.mxu0 0.0
        %831 = vmatpush2.msra.mxu0 0.0
        %832 = vmatprep.subr.mxu0 0.0
        %833 = vmatpush2.msra.mxu0 0.0
        %834 = vmatprep.subr.mxu0 0.0
        %835 = vmatpush2.msra.mxu0 0.0
        %836 = vmatprep.subr.mxu0 0.0
        %837 = vmatpush2.msra.mxu0 0.0
        %838 = vmatprep.mubr.f32.mxu0 0.0
        %839 = vmatmul.mubr.f32.gmra.mxu0 %v568
        %v840 = vpop.f32.mrf.mxu0
        %v841 = vadd.f32 0.0, %v840
        %v842 = vpop.f32.mrf.mxu0
        %843 = vmatprep.mubr.f32.mxu0 0.0
        %844 = vmatmul.mubr.f32.gmra.mxu0 %v571
        %v845 = vpop.f32.mrf.mxu0
        %v846 = vadd.f32 0.0, %v845
        %v847 = vpop.f32.mrf.mxu0
        %848 = vmatprep.mubr.f32.mxu0 0.0
        %849 = vmatmul.mubr.f32.gmra.mxu0 %v574
        %v850 = vpop.f32.mrf.mxu0
        %v851 = vadd.f32 0.0, %v850
        %v852 = vpop.f32.mrf.mxu0
        %853 = vmatprep.mubr.f32.mxu0 0.0
        %854 = vmatmul.mubr.f32.gmra.mxu0 %v577
        %v855 = vpop.f32.mrf.mxu0
        %v856 = vadd.f32 0.0, %v855
        %v857 = vpop.f32.mrf.mxu0
        %858 = vdwg.mxu0
        %v859 = vadd.f32 %v546, %v841
        %v860 = vadd.f32 %v551, %v846
        %v861 = vadd.f32 %v556, %v851
        %v862 = vadd.f32 %v561, %v856
        %s863 = scalar_lea.vmem %s206, 64 [#allocation6]
        %864 = vst [vmem:[%s863] sm:$0xff] %v859
        %865 = vst [vmem:[%s863 + $0x8] sm:$0xff] %v860
        %866 = vst [vmem:[%s863 + $0x10] sm:$0xff] %v861
        %867 = vst [vmem:[%s863 + $0x18] sm:$0xff] %v862
        %s868 = scalar_lea.vmem [#allocation2], 72
        %v869 = vld [vmem:[%s868] sm:$0xff]
        %v870 = vld [vmem:[%s868 + $0x8] sm:$0xff]
        %v871 = vld [vmem:[%s868 + $0x10] sm:$0xff]
        %872 = vmatprep.subr.mxu0 0.0
        %873 = vmatpush1.msra.mxu0 0.0
        %874 = vmatprep.subr.mxu0 0.0
        %875 = vmatpush1.msra.mxu0 0.0
        %876 = vmatprep.subr.mxu0 0.0
        %877 = vmatpush1.msra.mxu0 0.0
        %878 = vmatprep.subr.mxu0 0.0
        %879 = vmatpush1.msra.mxu0 0.0
        %880 = vmatprep.subr.mxu0 0.0
        %881 = vmatpush1.msra.mxu0 0.0
        %882 = vmatprep.subr.mxu0 0.0
        %883 = vmatpush1.msra.mxu0 0.0
        %884 = vmatprep.subr.mxu0 0.0
        %885 = vmatpush1.msra.mxu0 0.0
        %886 = vmatprep.subr.mxu0 0.0
        %887 = vmatpush1.msra.mxu0 0.0
        %888 = vmatprep.subr.mxu0 0.0
        %889 = vmatpush1.msra.mxu0 0.0
        %890 = vmatprep.subr.mxu0 0.0
        %891 = vmatpush1.msra.mxu0 0.0
        %892 = vmatprep.subr.mxu0 0.0
        %893 = vmatpush1.msra.mxu0 0.0
        %894 = vmatprep.subr.mxu0 0.0
        %895 = vmatpush1.msra.mxu0 0.0
        %896 = vmatprep.subr.mxu0 0.0
        %897 = vmatpush1.msra.mxu0 0.0
        %898 = vmatprep.subr.mxu0 0.0
        %899 = vmatpush1.msra.mxu0 %v871
        %900 = vmatprep.subr.mxu0 0.0
        %901 = vmatpush1.msra.mxu0 %v870
        %902 = vmatprep.subr.mxu0 0.0
        %903 = vmatpush1.msra.mxu0 %v869
        %904 = vmatprep.subr.mxu0 0.0
        %905 = vmatpush2.msra.mxu0 0.0
        %906 = vmatprep.subr.mxu0 0.0
        %907 = vmatpush2.msra.mxu0 0.0
        %908 = vmatprep.subr.mxu0 0.0
        %909 = vmatpush2.msra.mxu0 0.0
        %910 = vmatprep.subr.mxu0 0.0
        %911 = vmatpush2.msra.mxu0 0.0
        %912 = vmatprep.subr.mxu0 0.0
        %913 = vmatpush2.msra.mxu0 0.0
        %914 = vmatprep.subr.mxu0 0.0
        %915 = vmatpush2.msra.mxu0 0.0
        %916 = vmatprep.subr.mxu0 0.0
        %917 = vmatpush2.msra.mxu0 0.0
        %918 = vmatprep.subr.mxu0 0.0
        %919 = vmatpush2.msra.mxu0 0.0
        %920 = vmatprep.subr.mxu0 0.0
        %921 = vmatpush2.msra.mxu0 0.0
        %922 = vmatprep.subr.mxu0 0.0
        %923 = vmatpush2.msra.mxu0 0.0
        %924 = vmatprep.subr.mxu0 0.0
        %925 = vmatpush2.msra.mxu0 0.0
        %926 = vmatprep.subr.mxu0 0.0
        %927 = vmatpush2.msra.mxu0 0.0
        %928 = vmatprep.subr.mxu0 0.0
        %929 = vmatpush2.msra.mxu0 0.0
        %930 = vmatprep.subr.mxu0 0.0
        %931 = vmatpush2.msra.mxu0 0.0
        %932 = vmatprep.subr.mxu0 0.0
        %933 = vmatpush2.msra.mxu0 0.0
        %934 = vmatprep.subr.mxu0 0.0
        %935 = vmatpush2.msra.mxu0 0.0
        %936 = vmatprep.mubr.f32.mxu0 0.0
        %937 = vmatmul.mubr.f32.gmra.mxu0 %v568
        %v938 = vpop.f32.mrf.mxu0
        %v939 = vadd.f32 0.0, %v938
        %v940 = vpop.f32.mrf.mxu0
        %941 = vmatprep.mubr.f32.mxu0 0.0
        %942 = vmatmul.mubr.f32.gmra.mxu0 %v571
        %v943 = vpop.f32.mrf.mxu0
        %v944 = vadd.f32 0.0, %v943
        %v945 = vpop.f32.mrf.mxu0
        %946 = vmatprep.mubr.f32.mxu0 0.0
        %947 = vmatmul.mubr.f32.gmra.mxu0 %v574
        %v948 = vpop.f32.mrf.mxu0
        %v949 = vadd.f32 0.0, %v948
        %v950 = vpop.f32.mrf.mxu0
        %951 = vmatprep.mubr.f32.mxu0 0.0
        %952 = vmatmul.mubr.f32.gmra.mxu0 %v577
        %v953 = vpop.f32.mrf.mxu0
        %v954 = vadd.f32 0.0, %v953
        %v955 = vpop.f32.mrf.mxu0
        %956 = vdwg.mxu0
        %v957 = vadd.f32 %v546, %v939
        %v958 = vadd.f32 %v551, %v944
        %v959 = vadd.f32 %v556, %v949
        %v960 = vadd.f32 %v561, %v954
        %s961 = scalar_lea.vmem %s206, 96 [#allocation6]
        %962 = vst [vmem:[%s961] sm:$0xff] %v957
        %963 = vst [vmem:[%s961 + $0x8] sm:$0xff] %v958
        %964 = vst [vmem:[%s961 + $0x10] sm:$0xff] %v959
        %965 = vst [vmem:[%s961 + $0x18] sm:$0xff] %v960
        %s966 = sand.u32 %s116, 1
        %s967 = scalar_lea.sflag [#allocation5], %s966
        %s968 = sand.u32 %s116, 1
        %s969 = smul.addr %s968, 128
        %s970 = scalar_lea.vmem [#allocation6], %s969
        // Predicated region
        $region41: #{tpu_custom_call.1} parent=35 // pred_check
          %p971 = pneg %p126
        $region42: #{tpu_custom_call.1} parent=35 // pred_check_branch
          %973 = sbr.rel (%p971) target = $region44
        $region43: #{tpu_custom_call.1} parent=35 // pred_region
          %s974 = smul.u32 4, %s19
          %s976 = ssub.s32 2048, 2048
          %977 = vsyncadd %s967, %s976
          %s978 = smul.addr %s974, 4
          %s979 = smul.addr %s978, 128
          %s980 = scalar_lea.hbm %s4, %s979
          %s981 = sshll.u32 %s970, 4
          %s982 = int_to_ptr.vmem [resolvable:$true] %s981
          %987 = dma.vmem_to_hbm [thread:$0]  %s982, 2048, %s980, %s967, 128, 128, 8
        $region44: #{tpu_custom_call.1} parent=35 // pred_fallthru
          _
      $region36: #{tpu_custom_call.1} parent=5 // pred_fallthru
        _
      %p988 = scmp.le.s32.totalorder 2, %s14
      // Predicated region
      $region45: #{tpu_custom_call.1} parent=5 // pred_check
        %p989 = pneg %p988
      $region46: #{tpu_custom_call.1} parent=5 // pred_check_branch
        %991 = sbr.rel (%p989) target = $region48
      $region47: #{tpu_custom_call.1} parent=5 // pred_region
        %s992 = ssub.s32 %s14, 2
        // Predicated region
        $region49: #{tpu_custom_call.1} parent=47 // pred_check
          %p993 = pneg %p132
        $region50: #{tpu_custom_call.1} parent=47 // pred_check_branch
          %995 = sbr.rel (%p993) target = $region52
        $region51: #{tpu_custom_call.1} parent=47 // pred_region
          %s996 = sand.u32 %s117, 1
          %s997 = scalar_lea.sflag [#allocation5], %s996
          %s998 = sand.u32 %s117, 1
          %s999 = smul.addr %s998, 128
          %s1000 = scalar_lea.vmem [#allocation6], %s999
          %1001 = dma.done %s997, 2048
        $region52: #{tpu_custom_call.1} parent=47 // pred_fallthru
          _
      $region48: #{tpu_custom_call.1} parent=5 // pred_fallthru
        _
    $region6: #{tpu_custom_call.1} parent=1 // loop_footer
      %s18 = sadd.s32 1, %s14
    $region7: #{tpu_custom_call.1} parent=1 // loop_footer_branch
      %13 = sbr.rel target = $region3
    $region8: #{tpu_custom_call.1} parent=1 // loop_exit
      _
    %1002 = vsyncpa [#allocation4], 1
    %s1003 = scalar_lea.sflag [#allocation4], 1
    %1004 = vsyncpa %s1003, 1
    %1005 = vsyncpa [#allocation5], 1
    %s1006 = scalar_lea.sflag [#allocation5], 1
    %1007 = vsyncpa %s1006, 1

// kernel: tpu_custom_call.1
$region0: #{tpu_custom_call.1}
  #allocation0 [shape = 'u32[]', space=smem, size = 0x4, offset = 0x4, fixed_abs, tag = 'smem constant byte address 0x4 - core index']
  #allocation1 [shape = 'u32[144,128]{1,0:T(1,128)}', space=vmem, size = 0x12000, scoped, tag = 'internal scratch']
  #allocation2 [shape = 'f32[4,24,128]{2,1,0:T(8,128)}', space=vmem, size = 0xc000, scoped, tag = 'scratch operand']
  %s0 = inlined_call_operand.vmem [shape: f32[64,128], index: 0, kind: input, shape index: {}]
  %s1 = inlined_call_operand.hbm [shape: f32[3,128,128], index: 1, kind: input, shape index: {}]
  %s2 = inlined_call_operand.vmem [shape: f32[32,24], index: 2, kind: input, shape index: {}]
  %s3 = inlined_call_operand.vmem [shape: f32[32,1], index: 3, kind: input, shape index: {}]
  %s4 = inlined_call_operand.hbm [shape: f32[8,32,128], index: 4, kind: output, shape index: {}]
  %s5 = sld [smem:[#allocation0]]
  $region53: #{tpu_custom_call.1} parent=0
    _
  %s7 = ssub.s32 1, %s5
  %s8 = scalar_select 0, %s7, %s5
  $region1: #{tpu_custom_call.1} parent=0
    #allocation3 [shape = 'u8[196608]{0}', space=vmem, size = 0x30000, scoped, tag = 'input window, operand 1, single buffered']
    #allocation4 [shape = 's32[2]{0}', space=sflag, size = 0x8, scoped, tag = 'scoped memory for tpu_custom_call.1']
    #allocation5 [shape = 's32[2]{0}', space=sflag, size = 0x8, scoped, tag = 'scoped memory for tpu_custom_call.1']
    #allocation6 [shape = 'u8[131072]{0}', space=vmem, size = 0x20000, scoped, tag = 'output window, operand 0']
    %9 = vsyncpa [#allocation4], 0
    %10 = vsyncpa [#allocation5], 0
    %s11 = scalar_lea.sflag [#allocation5], 1
    %12 = vsyncpa %s11, 0
    loop: start=0, step=1, limit=4
    $region2: #{tpu_custom_call.1} parent=1 // loop_pre_header
      _
    $region3: #{tpu_custom_call.1} parent=1 // loop_header
      %s14 = sphi 0, %s18
      %p15 = scmp.ge.s32.totalorder %s14, 4
      %s24 = sphi 0, %s26
      %s27 = sphi 0, %s24
      %s28 = sphi 0, %s27
      %s44 = sphi 0, %s28
      %s48 = sphi 0, %s48
      %s50 = sphi 0, %s48
      %s51 = sphi 0, %s50
      %s65 = sphi 0, %s51
      %s69 = sphi 0, %s69
      %s71 = sphi 0, %s69
      %s72 = sphi 0, %s71
      %s86 = sphi 0, %s72
      %s90 = sphi 0, %s90
      %s92 = sphi 0, %s90
      %s93 = sphi 0, %s92
      %s107 = sphi 0, %s93
      %s113 = sphi 0, %s115
      %s116 = sphi 0, %s113
      %s117 = sphi 0, %s116
      %s133 = sphi 0, %s117
    $region4: #{tpu_custom_call.1} parent=1 // loop_header_branch
      %17 = sbr.rel (%p15) target = $region8
    $region5: #{tpu_custom_call.1} parent=1 // loop_body
      %s19 = ssub.s32 %s14, 1
      %s20 = ssub.s32 %s14, 2
      %s21 = sadd.s32 %s14, 1
      %s22 = ssub.s32 %s14, %s21
      %p23 = scmp.eq.s32.totalorder %s22, 0
      %s25 = sadd.s32 %s24, 1
      %s26 = scalar_select %p23, %s24, %s25
      %p29 = pneg %p23
      %p30 = scmp.eq.s32.totalorder %s14, 1
      %p31 = por %p29, %p30
      %p32 = scmp.ne.s32.totalorder %s24, %s27
      %p33 = scmp.eq.s32.totalorder %s14, 0
      %p34 = por %p32, %p33
      %p35 = scmp.ne.s32.totalorder %s24, %s27
      %p36 = scmp.eq.s32.totalorder %s19, 1
      %p37 = por %p35, %p36
      %p38 = scmp.ne.s32.totalorder %s27, %s28
      %p39 = scmp.eq.s32.totalorder %s19, 0
      %p40 = por %p38, %p39
      %p41 = scmp.ne.s32.totalorder %s27, %s28
      %p42 = scmp.eq.s32.totalorder %s20, 1
      %p43 = por %p41, %p42
      %p45 = scmp.ne.s32.totalorder %s28, %s44
      %p46 = scmp.eq.s32.totalorder %s20, 0
      %p47 = por %p45, %p46
      %s49 = sadd.s32 %s48, 1
      %p52 = scmp.eq.s32.totalorder %s14, 1
      %p53 = scmp.ne.s32.totalorder %s48, %s50
      %p54 = scmp.eq.s32.totalorder %s14, 0
      %p55 = por %p53, %p54
      %p56 = scmp.ne.s32.totalorder %s48, %s50
      %p57 = scmp.eq.s32.totalorder %s19, 1
      %p58 = por %p56, %p57
      %p59 = scmp.ne.s32.totalorder %s50, %s51
      %p60 = scmp.eq.s32.totalorder %s19, 0
      %p61 = por %p59, %p60
      %p62 = scmp.ne.s32.totalorder %s50, %s51
      %p63 = scmp.eq.s32.totalorder %s20, 1
      %p64 = por %p62, %p63
      %p66 = scmp.ne.s32.totalorder %s51, %s65
      %p67 = scmp.eq.s32.totalorder %s20, 0
      %p68 = por %p66, %p67
      %s70 = sadd.s32 %s69, 1
      %p73 = scmp.eq.s32.totalorder %s14, 1
      %p74 = scmp.ne.s32.totalorder %s69, %s71
      %p75 = scmp.eq.s32.totalorder %s14, 0
      %p76 = por %p74, %p75
      %p77 = scmp.ne.s32.totalorder %s69, %s71
      %p78 = scmp.eq.s32.totalorder %s19, 1
      %p79 = por %p77, %p78
      %p80 = scmp.ne.s32.totalorder %s71, %s72
      %p81 = scmp.eq.s32.totalorder %s19, 0
      %p82 = por %p80, %p81
      %p83 = scmp.ne.s32.totalorder %s71, %s72
      %p84 = scmp.eq.s32.totalorder %s20, 1
      %p85 = por %p83, %p84
      %p87 = scmp.ne.s32.totalorder %s72, %s86
      %p88 = scmp.eq.s32.totalorder %s20, 0
      %p89 = por %p87, %p88
      %s91 = sadd.s32 %s90, 1
      %p94 = scmp.eq.s32.totalorder %s14, 1
      %p95 = scmp.ne.s32.totalorder %s90, %s92
      %p96 = scmp.eq.s32.totalorder %s14, 0
      %p97 = por %p95, %p96
      %p98 = scmp.ne.s32.totalorder %s90, %s92
      %p99 = scmp.eq.s32.totalorder %s19, 1
      %p100 = por %p98, %p99
      %p101 = scmp.ne.s32.totalorder %s92, %s93
      %p102 = scmp.eq.s32.totalorder %s19, 0
      %p103 = por %p101, %p102
      %p104 = scmp.ne.s32.totalorder %s92, %s93
      %p105 = scmp.eq.s32.totalorder %s20, 1
      %p106 = por %p104, %p105
      %p108 = scmp.ne.s32.totalorder %s93, %s107
      %p109 = scmp.eq.s32.totalorder %s20, 0
      %p110 = por %p108, %p109
      %s111 = ssub.s32 %s14, %s21
      %p112 = scmp.eq.s32.totalorder %s111, 0
      %s114 = sadd.s32 %s113, 1
      %s115 = scalar_select %p112, %s113, %s114
      %p118 = pneg %p112
      %p119 = scmp.eq.s32.totalorder %s14, 1
      %p120 = por %p118, %p119
      %p121 = scmp.ne.s32.totalorder %s113, %s116
      %p122 = scmp.eq.s32.totalorder %s14, 0
      %p123 = por %p121, %p122
      %p124 = scmp.ne.s32.totalorder %s113, %s116
      %p125 = scmp.eq.s32.totalorder %s19, 1
      %p126 = por %p124, %p125
      %p127 = scmp.ne.s32.totalorder %s116, %s117
      %p128 = scmp.eq.s32.totalorder %s19, 0
      %p129 = por %p127, %p128
      %p130 = scmp.ne.s32.totalorder %s116, %s117
      %p131 = scmp.eq.s32.totalorder %s20, 1
      %p132 = por %p130, %p131
      %p134 = scmp.ne.s32.totalorder %s117, %s133
      %p135 = scmp.eq.s32.totalorder %s20, 0
      %p136 = por %p134, %p135
      %p137 = scmp.le.s32.totalorder 1, %s14
      %p138 = scmp.lt.s32.totalorder %s14, 3
      %p139 = pnand %p137, %p138
      %p140 = pneg %p139
      // Predicated region
      $region9: #{tpu_custom_call.1} parent=5 // pred_check
        _
      $region10: #{tpu_custom_call.1} parent=5 // pred_check_branch
        %142 = sbr.rel (%p139) target = $region12
      $region11: #{tpu_custom_call.1} parent=5 // pred_region
        %s143 = ssub.s32 %s14, 1
        // Predicated region
        $region13: #{tpu_custom_call.1} parent=11 // pred_check
          %p144 = pneg %p61
        $region14: #{tpu_custom_call.1} parent=11 // pred_check_branch
          %146 = sbr.rel (%p144) target = $region16
        $region15: #{tpu_custom_call.1} parent=11 // pred_region
          %s148 = ssub.s32 6144, 6144
          %149 = vsyncadd [#allocation4], %s148
          %s150 = sshll.u32 [#allocation3], 4
          %s151 = int_to_ptr.vmem [resolvable:$true] %s150
          %156 = dma.hbm_to_vmem [thread:$0]  %s1, 6144, %s151, [#allocation4], 128, 128, 8
        $region16: #{tpu_custom_call.1} parent=11 // pred_fallthru
          _
        // Predicated region
        $region17: #{tpu_custom_call.1} parent=11 // pred_check
          %p157 = pneg %p82
        $region18: #{tpu_custom_call.1} parent=11 // pred_check_branch
          %159 = sbr.rel (%p157) target = $region20
        $region19: #{tpu_custom_call.1} parent=11 // pred_region
          _
        $region20: #{tpu_custom_call.1} parent=11 // pred_fallthru
          _
        // Predicated region
        $region21: #{tpu_custom_call.1} parent=11 // pred_check
          %p160 = pneg %p103
        $region22: #{tpu_custom_call.1} parent=11 // pred_check_branch
          %162 = sbr.rel (%p160) target = $region24
        $region23: #{tpu_custom_call.1} parent=11 // pred_region
          _
        $region24: #{tpu_custom_call.1} parent=11 // pred_fallthru
          _
      $region12: #{tpu_custom_call.1} parent=5 // pred_fallthru
        _
      %p163 = scmp.lt.s32.totalorder %s14, 2
      // Predicated region
      $region25: #{tpu_custom_call.1} parent=5 // pred_check
        %p164 = pneg %p163
      $region26: #{tpu_custom_call.1} parent=5 // pred_check_branch
        %166 = sbr.rel (%p164) target = $region28
      $region27: #{tpu_custom_call.1} parent=5 // pred_region
        // Predicated region
        $region29: #{tpu_custom_call.1} parent=27 // pred_check
          %p167 = pneg %p34
        $region30: #{tpu_custom_call.1} parent=27 // pred_check_branch
          %169 = sbr.rel (%p167) target = $region32
        $region31: #{tpu_custom_call.1} parent=27 // pred_region
          %s170 = smul.u32 4, %s14
          %p171 = scmp.lt.s32.totalorder %s170, 7
          %s172 = scalar_select %p171, %s170, 7
          %s173 = smul.addr %s172, 8
          %s174 = scalar_lea.vmem %s0, %s173
          %s175 = smul.u32 4, %s14
        $region32: #{tpu_custom_call.1} parent=27 // pred_fallthru
          _
      $region28: #{tpu_custom_call.1} parent=5 // pred_fallthru
        _
      %p176 = scmp.le.s32.totalorder 1, %s14
      %p177 = scmp.lt.s32.totalorder %s14, 3
      %p178 = pnand %p176, %p177
      %p179 = pneg %p178
      // Predicated region
      $region33: #{tpu_custom_call.1} parent=5 // pred_check
        _
      $region34: #{tpu_custom_call.1} parent=5 // pred_check_branch
        %181 = sbr.rel (%p178) target = $region36
      $region35: #{tpu_custom_call.1} parent=5 // pred_region
        %s182 = ssub.s32 %s14, 1
        // Predicated region
        $region37: #{tpu_custom_call.1} parent=35 // pred_check
          %p183 = pneg %p61
        $region38: #{tpu_custom_call.1} parent=35 // pred_check_branch
          %185 = sbr.rel (%p183) target = $region40
        $region39: #{tpu_custom_call.1} parent=35 // pred_region
          %186 = dma.done [#allocation4], 6144
        $region40: #{tpu_custom_call.1} parent=35 // pred_fallthru
          _
        %s187 = smul.u32 4, %s19
        %p188 = scmp.lt.s32.totalorder %s187, 7
        %s189 = scalar_select %p188, %s187, 7
        %s190 = smul.addr %s189, 8
        %s191 = scalar_lea.vmem %s0, %s190
        %p192 = pneg %p40
        %p193 = pneg %p37
        %p194 = pneg %p61
        %p195 = pneg %p58
        %p196 = pneg %p82
        %p197 = pneg %p79
        %p198 = pneg %p103
        %p199 = pneg %p100
        %p200 = pneg %p129
        %p201 = pneg %p126
        %s202 = sand.u32 %s116, 1
        %s203 = scalar_lea.sflag [#allocation5], %s202
        %s204 = sand.u32 %s116, 1
        %s205 = smul.addr %s204, 128
        %s206 = scalar_lea.vmem [#allocation6], %s205
        %s207 = smul.u32 4, %s19
        %p208 = scmp.lt.s32.totalorder %s207, 7
        %s209 = scalar_select %p208, %s207, 7
        %s210 = smul.addr %s209, 8
        %s211 = scalar_lea.vmem %s0, %s210
        %s212 = smul.u32 4, %s19
        %s213 = smul.u32 4, %s19
        %v214 = vld [vmem:[%s211] sm:$0xff]
        %v215 = vld [vmem:[%s211 + $0x8] sm:$0xff]
        %v216 = vld [vmem:[%s211 + $0x10] sm:$0xff]
        %v217 = vld [vmem:[%s211 + $0x18] sm:$0xff]
        %v218 = vld [vmem:[#allocation3] sm:$0xff]
        %v219 = vld [vmem:[#allocation3 + $0x8] sm:$0xff]
        %v220 = vld [vmem:[#allocation3 + $0x10] sm:$0xff]
        %v221 = vld [vmem:[#allocation3 + $0x18] sm:$0xff]
        %v222 = vld [vmem:[#allocation3 + $0x20] sm:$0xff]
        %v223 = vld [vmem:[#allocation3 + $0x28] sm:$0xff]
        %v224 = vld [vmem:[#allocation3 + $0x30] sm:$0xff]
        %v225 = vld [vmem:[#allocation3 + $0x38] sm:$0xff]
        %v226 = vld [vmem:[#allocation3 + $0x40] sm:$0xff]
        %v227 = vld [vmem:[#allocation3 + $0x48] sm:$0xff]
        %v228 = vld [vmem:[#allocation3 + $0x50] sm:$0xff]
        %v229 = vld [vmem:[#allocation3 + $0x58] sm:$0xff]
        %v230 = vld [vmem:[#allocation3 + $0x60] sm:$0xff]
        %v231 = vld [vmem:[#allocation3 + $0x68] sm:$0xff]
        %v232 = vld [vmem:[#allocation3 + $0x70] sm:$0xff]
        %v233 = vld [vmem:[#allocation3 + $0x78] sm:$0xff]
        %234 = vmatprep.subr.mxu0 0.0
        %235 = vmatpush1.msra.mxu0 %v233
        %236 = vmatprep.subr.mxu0 0.0
        %237 = vmatpush1.msra.mxu0 %v232
        %238 = vmatprep.subr.mxu0 0.0
        %239 = vmatpush1.msra.mxu0 %v231
        %240 = vmatprep.subr.mxu0 0.0
        %241 = vmatpush1.msra.mxu0 %v230
        %242 = vmatprep.subr.mxu0 0.0
        %243 = vmatpush1.msra.mxu0 %v229
        %244 = vmatprep.subr.mxu0 0.0
        %245 = vmatpush1.msra.mxu0 %v228
        %246 = vmatprep.subr.mxu0 0.0
        %247 = vmatpush1.msra.mxu0 %v227
        %248 = vmatprep.subr.mxu0 0.0
        %249 = vmatpush1.msra.mxu0 %v226
        %250 = vmatprep.subr.mxu0 0.0
        %251 = vmatpush1.msra.mxu0 %v225
        %252 = vmatprep.subr.mxu0 0.0
        %253 = vmatpush1.msra.mxu0 %v224
        %254 = vmatprep.subr.mxu0 0.0
        %255 = vmatpush1.msra.mxu0 %v223
        %256 = vmatprep.subr.mxu0 0.0
        %257 = vmatpush1.msra.mxu0 %v222
        %258 = vmatprep.subr.mxu0 0.0
        %259 = vmatpush1.msra.mxu0 %v221
        %260 = vmatprep.subr.mxu0 0.0
        %261 = vmatpush1.msra.mxu0 %v220
        %262 = vmatprep.subr.mxu0 0.0
        %263 = vmatpush1.msra.mxu0 %v219
        %264 = vmatprep.subr.mxu0 0.0
        %265 = vmatpush1.msra.mxu0 %v218
        %266 = vmatprep.subr.mxu0 0.0
        %267 = vmatpush2.msra.mxu0 0.0
        %268 = vmatprep.subr.mxu0 0.0
        %269 = vmatpush2.msra.mxu0 0.0
        %270 = vmatprep.subr.mxu0 0.0
        %271 = vmatpush2.msra.mxu0 0.0
        %272 = vmatprep.subr.mxu0 0.0
        %273 = vmatpush2.msra.mxu0 0.0
        %274 = vmatprep.subr.mxu0 0.0
        %275 = vmatpush2.msra.mxu0 0.0
        %276 = vmatprep.subr.mxu0 0.0
        %277 = vmatpush2.msra.mxu0 0.0
        %278 = vmatprep.subr.mxu0 0.0
        %279 = vmatpush2.msra.mxu0 0.0
        %280 = vmatprep.subr.mxu0 0.0
        %281 = vmatpush2.msra.mxu0 0.0
        %282 = vmatprep.subr.mxu0 0.0
        %283 = vmatpush2.msra.mxu0 0.0
        %284 = vmatprep.subr.mxu0 0.0
        %285 = vmatpush2.msra.mxu0 0.0
        %286 = vmatprep.subr.mxu0 0.0
        %287 = vmatpush2.msra.mxu0 0.0
        %288 = vmatprep.subr.mxu0 0.0
        %289 = vmatpush2.msra.mxu0 0.0
        %290 = vmatprep.subr.mxu0 0.0
        %291 = vmatpush2.msra.mxu0 0.0
        %292 = vmatprep.subr.mxu0 0.0
        %293 = vmatpush2.msra.mxu0 0.0
        %294 = vmatprep.subr.mxu0 0.0
        %295 = vmatpush2.msra.mxu0 0.0
        %296 = vmatprep.subr.mxu0 0.0
        %297 = vmatpush2.msra.mxu0 0.0
        %298 = vmatprep.mubr.f32.mxu0 0.0
        %299 = vmatmul.mubr.f32.gmra.mxu0 %v214
        %v300 = vpop.f32.mrf.mxu0
        %v301 = vadd.f32 0.0, %v300
        %v302 = vpop.f32.mrf.mxu0
        %303 = vmatprep.mubr.f32.mxu0 0.0
        %304 = vmatmul.mubr.f32.gmra.mxu0 %v215
        %v305 = vpop.f32.mrf.mxu0
        %v306 = vadd.f32 0.0, %v305
        %v307 = vpop.f32.mrf.mxu0
        %308 = vmatprep.mubr.f32.mxu0 0.0
        %309 = vmatmul.mubr.f32.gmra.mxu0 %v216
        %v310 = vpop.f32.mrf.mxu0
        %v311 = vadd.f32 0.0, %v310
        %v312 = vpop.f32.mrf.mxu0
        %313 = vmatprep.mubr.f32.mxu0 0.0
        %314 = vmatmul.mubr.f32.gmra.mxu0 %v217
        %v315 = vpop.f32.mrf.mxu0
        %v316 = vadd.f32 0.0, %v315
        %v317 = vpop.f32.mrf.mxu0
        %318 = vdwg.mxu0
        %319 = vst [vmem:[#allocation2] sm:$0xff] %v301
        %320 = vst [vmem:[#allocation2 + $0x18] sm:$0xff] %v306
        %321 = vst [vmem:[#allocation2 + $0x30] sm:$0xff] %v311
        %322 = vst [vmem:[#allocation2 + $0x48] sm:$0xff] %v316
        %s323 = scalar_lea.vmem [#allocation3], 128
        %v324 = vld [vmem:[%s323] sm:$0xff]
        %v325 = vld [vmem:[%s323 + $0x8] sm:$0xff]
        %v326 = vld [vmem:[%s323 + $0x10] sm:$0xff]
        %v327 = vld [vmem:[%s323 + $0x18] sm:$0xff]
        %v328 = vld [vmem:[%s323 + $0x20] sm:$0xff]
        %v329 = vld [vmem:[%s323 + $0x28] sm:$0xff]
        %v330 = vld [vmem:[%s323 + $0x30] sm:$0xff]
        %v331 = vld [vmem:[%s323 + $0x38] sm:$0xff]
        %v332 = vld [vmem:[%s323 + $0x40] sm:$0xff]
        %v333 = vld [vmem:[%s323 + $0x48] sm:$0xff]
        %v334 = vld [vmem:[%s323 + $0x50] sm:$0xff]
        %v335 = vld [vmem:[%s323 + $0x58] sm:$0xff]
        %v336 = vld [vmem:[%s323 + $0x60] sm:$0xff]
        %v337 = vld [vmem:[%s323 + $0x68] sm:$0xff]
        %v338 = vld [vmem:[%s323 + $0x70] sm:$0xff]
        %v339 = vld [vmem:[%s323 + $0x78] sm:$0xff]
        %340 = vmatprep.subr.mxu0 0.0
        %341 = vmatpush1.msra.mxu0 %v339
        %342 = vmatprep.subr.mxu0 0.0
        %343 = vmatpush1.msra.mxu0 %v338
        %344 = vmatprep.subr.mxu0 0.0
        %345 = vmatpush1.msra.mxu0 %v337
        %346 = vmatprep.subr.mxu0 0.0
        %347 = vmatpush1.msra.mxu0 %v336
        %348 = vmatprep.subr.mxu0 0.0
        %349 = vmatpush1.msra.mxu0 %v335
        %350 = vmatprep.subr.mxu0 0.0
        %351 = vmatpush1.msra.mxu0 %v334
        %352 = vmatprep.subr.mxu0 0.0
        %353 = vmatpush1.msra.mxu0 %v333
        %354 = vmatprep.subr.mxu0 0.0
        %355 = vmatpush1.msra.mxu0 %v332
        %356 = vmatprep.subr.mxu0 0.0
        %357 = vmatpush1.msra.mxu0 %v331
        %358 = vmatprep.subr.mxu0 0.0
        %359 = vmatpush1.msra.mxu0 %v330
        %360 = vmatprep.subr.mxu0 0.0
        %361 = vmatpush1.msra.mxu0 %v329
        %362 = vmatprep.subr.mxu0 0.0
        %363 = vmatpush1.msra.mxu0 %v328
        %364 = vmatprep.subr.mxu0 0.0
        %365 = vmatpush1.msra.mxu0 %v327
        %366 = vmatprep.subr.mxu0 0.0
        %367 = vmatpush1.msra.mxu0 %v326
        %368 = vmatprep.subr.mxu0 0.0
        %369 = vmatpush1.msra.mxu0 %v325
        %370 = vmatprep.subr.mxu0 0.0
        %371 = vmatpush1.msra.mxu0 %v324
        %372 = vmatprep.subr.mxu0 0.0
        %373 = vmatpush2.msra.mxu0 0.0
        %374 = vmatprep.subr.mxu0 0.0
        %375 = vmatpush2.msra.mxu0 0.0
        %376 = vmatprep.subr.mxu0 0.0
        %377 = vmatpush2.msra.mxu0 0.0
        %378 = vmatprep.subr.mxu0 0.0
        %379 = vmatpush2.msra.mxu0 0.0
        %380 = vmatprep.subr.mxu0 0.0
        %381 = vmatpush2.msra.mxu0 0.0
        %382 = vmatprep.subr.mxu0 0.0
        %383 = vmatpush2.msra.mxu0 0.0
        %384 = vmatprep.subr.mxu0 0.0
        %385 = vmatpush2.msra.mxu0 0.0
        %386 = vmatprep.subr.mxu0 0.0
        %387 = vmatpush2.msra.mxu0 0.0
        %388 = vmatprep.subr.mxu0 0.0
        %389 = vmatpush2.msra.mxu0 0.0
        %390 = vmatprep.subr.mxu0 0.0
        %391 = vmatpush2.msra.mxu0 0.0
        %392 = vmatprep.subr.mxu0 0.0
        %393 = vmatpush2.msra.mxu0 0.0
        %394 = vmatprep.subr.mxu0 0.0
        %395 = vmatpush2.msra.mxu0 0.0
        %396 = vmatprep.subr.mxu0 0.0
        %397 = vmatpush2.msra.mxu0 0.0
        %398 = vmatprep.subr.mxu0 0.0
        %399 = vmatpush2.msra.mxu0 0.0
        %400 = vmatprep.subr.mxu0 0.0
        %401 = vmatpush2.msra.mxu0 0.0
        %402 = vmatprep.subr.mxu0 0.0
        %403 = vmatpush2.msra.mxu0 0.0
        %404 = vmatprep.mubr.f32.mxu0 0.0
        %405 = vmatmul.mubr.f32.gmra.mxu0 %v214
        %v406 = vpop.f32.mrf.mxu0
        %v407 = vadd.f32 0.0, %v406
        %v408 = vpop.f32.mrf.mxu0
        %409 = vmatprep.mubr.f32.mxu0 0.0
        %410 = vmatmul.mubr.f32.gmra.mxu0 %v215
        %v411 = vpop.f32.mrf.mxu0
        %v412 = vadd.f32 0.0, %v411
        %v413 = vpop.f32.mrf.mxu0
        %414 = vmatprep.mubr.f32.mxu0 0.0
        %415 = vmatmul.mubr.f32.gmra.mxu0 %v216
        %v416 = vpop.f32.mrf.mxu0
        %v417 = vadd.f32 0.0, %v416
        %v418 = vpop.f32.mrf.mxu0
        %419 = vmatprep.mubr.f32.mxu0 0.0
        %420 = vmatmul.mubr.f32.gmra.mxu0 %v217
        %v421 = vpop.f32.mrf.mxu0
        %v422 = vadd.f32 0.0, %v421
        %v423 = vpop.f32.mrf.mxu0
        %424 = vdwg.mxu0
        %425 = vst [vmem:[#allocation2 + $0x8] sm:$0xff] %v407
        %426 = vst [vmem:[#allocation2 + $0x20] sm:$0xff] %v412
        %427 = vst [vmem:[#allocation2 + $0x38] sm:$0xff] %v417
        %428 = vst [vmem:[#allocation2 + $0x50] sm:$0xff] %v422
        %s429 = scalar_lea.vmem [#allocation3], 256
        %v430 = vld [vmem:[%s429] sm:$0xff]
        %v431 = vld [vmem:[%s429 + $0x8] sm:$0xff]
        %v432 = vld [vmem:[%s429 + $0x10] sm:$0xff]
        %v433 = vld [vmem:[%s429 + $0x18] sm:$0xff]
        %v434 = vld [vmem:[%s429 + $0x20] sm:$0xff]
        %v435 = vld [vmem:[%s429 + $0x28] sm:$0xff]
        %v436 = vld [vmem:[%s429 + $0x30] sm:$0xff]
        %v437 = vld [vmem:[%s429 + $0x38] sm:$0xff]
        %v438 = vld [vmem:[%s429 + $0x40] sm:$0xff]
        %v439 = vld [vmem:[%s429 + $0x48] sm:$0xff]
        %v440 = vld [vmem:[%s429 + $0x50] sm:$0xff]
        %v441 = vld [vmem:[%s429 + $0x58] sm:$0xff]
        %v442 = vld [vmem:[%s429 + $0x60] sm:$0xff]
        %v443 = vld [vmem:[%s429 + $0x68] sm:$0xff]
        %v444 = vld [vmem:[%s429 + $0x70] sm:$0xff]
        %v445 = vld [vmem:[%s429 + $0x78] sm:$0xff]
        %446 = vmatprep.subr.mxu0 0.0
        %447 = vmatpush1.msra.mxu0 %v445
        %448 = vmatprep.subr.mxu0 0.0
        %449 = vmatpush1.msra.mxu0 %v444
        %450 = vmatprep.subr.mxu0 0.0
        %451 = vmatpush1.msra.mxu0 %v443
        %452 = vmatprep.subr.mxu0 0.0
        %453 = vmatpush1.msra.mxu0 %v442
        %454 = vmatprep.subr.mxu0 0.0
        %455 = vmatpush1.msra.mxu0 %v441
        %456 = vmatprep.subr.mxu0 0.0
        %457 = vmatpush1.msra.mxu0 %v440
        %458 = vmatprep.subr.mxu0 0.0
        %459 = vmatpush1.msra.mxu0 %v439
        %460 = vmatprep.subr.mxu0 0.0
        %461 = vmatpush1.msra.mxu0 %v438
        %462 = vmatprep.subr.mxu0 0.0
        %463 = vmatpush1.msra.mxu0 %v437
        %464 = vmatprep.subr.mxu0 0.0
        %465 = vmatpush1.msra.mxu0 %v436
        %466 = vmatprep.subr.mxu0 0.0
        %467 = vmatpush1.msra.mxu0 %v435
        %468 = vmatprep.subr.mxu0 0.0
        %469 = vmatpush1.msra.mxu0 %v434
        %470 = vmatprep.subr.mxu0 0.0
        %471 = vmatpush1.msra.mxu0 %v433
        %472 = vmatprep.subr.mxu0 0.0
        %473 = vmatpush1.msra.mxu0 %v432
        %474 = vmatprep.subr.mxu0 0.0
        %475 = vmatpush1.msra.mxu0 %v431
        %476 = vmatprep.subr.mxu0 0.0
        %477 = vmatpush1.msra.mxu0 %v430
        %478 = vmatprep.subr.mxu0 0.0
        %479 = vmatpush2.msra.mxu0 0.0
        %480 = vmatprep.subr.mxu0 0.0
        %481 = vmatpush2.msra.mxu0 0.0
        %482 = vmatprep.subr.mxu0 0.0
        %483 = vmatpush2.msra.mxu0 0.0
        %484 = vmatprep.subr.mxu0 0.0
        %485 = vmatpush2.msra.mxu0 0.0
        %486 = vmatprep.subr.mxu0 0.0
        %487 = vmatpush2.msra.mxu0 0.0
        %488 = vmatprep.subr.mxu0 0.0
        %489 = vmatpush2.msra.mxu0 0.0
        %490 = vmatprep.subr.mxu0 0.0
        %491 = vmatpush2.msra.mxu0 0.0
        %492 = vmatprep.subr.mxu0 0.0
        %493 = vmatpush2.msra.mxu0 0.0
        %494 = vmatprep.subr.mxu0 0.0
        %495 = vmatpush2.msra.mxu0 0.0
        %496 = vmatprep.subr.mxu0 0.0
        %497 = vmatpush2.msra.mxu0 0.0
        %498 = vmatprep.subr.mxu0 0.0
        %499 = vmatpush2.msra.mxu0 0.0
        %500 = vmatprep.subr.mxu0 0.0
        %501 = vmatpush2.msra.mxu0 0.0
        %502 = vmatprep.subr.mxu0 0.0
        %503 = vmatpush2.msra.mxu0 0.0
        %504 = vmatprep.subr.mxu0 0.0
        %505 = vmatpush2.msra.mxu0 0.0
        %506 = vmatprep.subr.mxu0 0.0
        %507 = vmatpush2.msra.mxu0 0.0
        %508 = vmatprep.subr.mxu0 0.0
        %509 = vmatpush2.msra.mxu0 0.0
        %510 = vmatprep.mubr.f32.mxu0 0.0
        %511 = vmatmul.mubr.f32.gmra.mxu0 %v214
        %v512 = vpop.f32.mrf.mxu0
        %v513 = vadd.f32 0.0, %v512
        %v514 = vpop.f32.mrf.mxu0
        %515 = vmatprep.mubr.f32.mxu0 0.0
        %516 = vmatmul.mubr.f32.gmra.mxu0 %v215
        %v517 = vpop.f32.mrf.mxu0
        %v518 = vadd.f32 0.0, %v517
        %v519 = vpop.f32.mrf.mxu0
        %520 = vmatprep.mubr.f32.mxu0 0.0
        %521 = vmatmul.mubr.f32.gmra.mxu0 %v216
        %v522 = vpop.f32.mrf.mxu0
        %v523 = vadd.f32 0.0, %v522
        %v524 = vpop.f32.mrf.mxu0
        %525 = vmatprep.mubr.f32.mxu0 0.0
        %526 = vmatmul.mubr.f32.gmra.mxu0 %v217
        %v527 = vpop.f32.mrf.mxu0
        %v528 = vadd.f32 0.0, %v527
        %v529 = vpop.f32.mrf.mxu0
        %530 = vdwg.mxu0
        %531 = vst [vmem:[#allocation2 + $0x10] sm:$0xff] %v513
        %532 = vst [vmem:[#allocation2 + $0x28] sm:$0xff] %v518
        %533 = vst [vmem:[#allocation2 + $0x40] sm:$0xff] %v523
        %534 = vst [vmem:[#allocation2 + $0x58] sm:$0xff] %v528
        %v535 = vld [vmem:[%s2] sm:$0xff]
        %v536 = vld [vmem:[%s2 + $0x8] sm:$0xff]
        %v537 = vld [vmem:[%s2 + $0x10] sm:$0xff]
        %v538 = vld [vmem:[%s2 + $0x18] sm:$0xff]
        %v539 = vld [vmem:[%s3] sm:$0xff]
        %v540 = vld [vmem:[%s3 + $0x8] sm:$0xff]
        %v541 = vld [vmem:[%s3 + $0x10] sm:$0xff]
        %v542 = vld [vmem:[%s3 + $0x18] sm:$0xff]
        %544 = vset.pattern.permute.xlu0 0
        %545 = vperm.xlu0 %544, %v539
        %v546 = vpop.permute.xlu0 %545
        %549 = vset.pattern.permute.xlu0 0
        %550 = vperm.xlu0 %549, %v540
        %v551 = vpop.permute.xlu0 %550
        %554 = vset.pattern.permute.xlu0 0
        %555 = vperm.xlu0 %554, %v541
        %v556 = vpop.permute.xlu0 %555
        %559 = vset.pattern.permute.xlu0 0
        %560 = vperm.xlu0 %559, %v542
        %v561 = vpop.permute.xlu0 %560
        %v563 = vld [vmem:[#allocation2] sm:$0xff]
        %v564 = vld [vmem:[#allocation2 + $0x8] sm:$0xff]
        %v565 = vld [vmem:[#allocation2 + $0x10] sm:$0xff]
        %vm566 = vcmask 195584
        %v568 = vsel %vm566, %v535, 0
        %v571 = vsel %vm566, %v536, 0
        %v574 = vsel %vm566, %v537, 0
        %v577 = vsel %vm566, %v538, 0
        %579 = vmatprep.subr.mxu0 0.0
        %580 = vmatpush1.msra.mxu0 0.0
        %581 = vmatprep.subr.mxu0 0.0
        %582 = vmatpush1.msra.mxu0 0.0
        %583 = vmatprep.subr.mxu0 0.0
        %584 = vmatpush1.msra.mxu0 0.0
        %585 = vmatprep.subr.mxu0 0.0
        %586 = vmatpush1.msra.mxu0 0.0
        %587 = vmatprep.subr.mxu0 0.0
        %588 = vmatpush1.msra.mxu0 0.0
        %589 = vmatprep.subr.mxu0 0.0
        %590 = vmatpush1.msra.mxu0 0.0
        %591 = vmatprep.subr.mxu0 0.0
        %592 = vmatpush1.msra.mxu0 0.0
        %593 = vmatprep.subr.mxu0 0.0
        %594 = vmatpush1.msra.mxu0 0.0
        %595 = vmatprep.subr.mxu0 0.0
        %596 = vmatpush1.msra.mxu0 0.0
        %597 = vmatprep.subr.mxu0 0.0
        %598 = vmatpush1.msra.mxu0 0.0
        %599 = vmatprep.subr.mxu0 0.0
        %600 = vmatpush1.msra.mxu0 0.0
        %601 = vmatprep.subr.mxu0 0.0
        %602 = vmatpush1.msra.mxu0 0.0
        %603 = vmatprep.subr.mxu0 0.0
        %604 = vmatpush1.msra.mxu0 0.0
        %605 = vmatprep.subr.mxu0 0.0
        %606 = vmatpush1.msra.mxu0 %v565
        %607 = vmatprep.subr.mxu0 0.0
        %608 = vmatpush1.msra.mxu0 %v564
        %609 = vmatprep.subr.mxu0 0.0
        %610 = vmatpush1.msra.mxu0 %v563
        %611 = vmatprep.subr.mxu0 0.0
        %612 = vmatpush2.msra.mxu0 0.0
        %613 = vmatprep.subr.mxu0 0.0
        %614 = vmatpush2.msra.mxu0 0.0
        %615 = vmatprep.subr.mxu0 0.0
        %616 = vmatpush2.msra.mxu0 0.0
        %617 = vmatprep.subr.mxu0 0.0
        %618 = vmatpush2.msra.mxu0 0.0
        %619 = vmatprep.subr.mxu0 0.0
        %620 = vmatpush2.msra.mxu0 0.0
        %621 = vmatprep.subr.mxu0 0.0
        %622 = vmatpush2.msra.mxu0 0.0
        %623 = vmatprep.subr.mxu0 0.0
        %624 = vmatpush2.msra.mxu0 0.0
        %625 = vmatprep.subr.mxu0 0.0
        %626 = vmatpush2.msra.mxu0 0.0
        %627 = vmatprep.subr.mxu0 0.0
        %628 = vmatpush2.msra.mxu0 0.0
        %629 = vmatprep.subr.mxu0 0.0
        %630 = vmatpush2.msra.mxu0 0.0
        %631 = vmatprep.subr.mxu0 0.0
        %632 = vmatpush2.msra.mxu0 0.0
        %633 = vmatprep.subr.mxu0 0.0
        %634 = vmatpush2.msra.mxu0 0.0
        %635 = vmatprep.subr.mxu0 0.0
        %636 = vmatpush2.msra.mxu0 0.0
        %637 = vmatprep.subr.mxu0 0.0
        %638 = vmatpush2.msra.mxu0 0.0
        %639 = vmatprep.subr.mxu0 0.0
        %640 = vmatpush2.msra.mxu0 0.0
        %641 = vmatprep.subr.mxu0 0.0
        %642 = vmatpush2.msra.mxu0 0.0
        %643 = vmatprep.mubr.f32.mxu0 0.0
        %644 = vmatmul.mubr.f32.gmra.mxu0 %v568
        %v645 = vpop.f32.mrf.mxu0
        %v646 = vadd.f32 0.0, %v645
        %v647 = vpop.f32.mrf.mxu0
        %648 = vmatprep.mubr.f32.mxu0 0.0
        %649 = vmatmul.mubr.f32.gmra.mxu0 %v571
        %v650 = vpop.f32.mrf.mxu0
        %v651 = vadd.f32 0.0, %v650
        %v652 = vpop.f32.mrf.mxu0
        %653 = vmatprep.mubr.f32.mxu0 0.0
        %654 = vmatmul.mubr.f32.gmra.mxu0 %v574
        %v655 = vpop.f32.mrf.mxu0
        %v656 = vadd.f32 0.0, %v655
        %v657 = vpop.f32.mrf.mxu0
        %658 = vmatprep.mubr.f32.mxu0 0.0
        %659 = vmatmul.mubr.f32.gmra.mxu0 %v577
        %v660 = vpop.f32.mrf.mxu0
        %v661 = vadd.f32 0.0, %v660
        %v662 = vpop.f32.mrf.mxu0
        %663 = vdwg.mxu0
        %v664 = vadd.f32 %v546, %v646
        %v665 = vadd.f32 %v551, %v651
        %v666 = vadd.f32 %v556, %v656
        %v667 = vadd.f32 %v561, %v661
        %668 = vst [vmem:[%s206] sm:$0xff] %v664
        %669 = vst [vmem:[%s206 + $0x8] sm:$0xff] %v665
        %670 = vst [vmem:[%s206 + $0x10] sm:$0xff] %v666
        %671 = vst [vmem:[%s206 + $0x18] sm:$0xff] %v667
        %s672 = scalar_lea.vmem [#allocation2], 24
        %v673 = vld [vmem:[%s672] sm:$0xff]
        %v674 = vld [vmem:[%s672 + $0x8] sm:$0xff]
        %v675 = vld [vmem:[%s672 + $0x10] sm:$0xff]
        %676 = vmatprep.subr.mxu0 0.0
        %677 = vmatpush1.msra.mxu0 0.0
        %678 = vmatprep.subr.mxu0 0.0
        %679 = vmatpush1.msra.mxu0 0.0
        %680 = vmatprep.subr.mxu0 0.0
        %681 = vmatpush1.msra.mxu0 0.0
        %682 = vmatprep.subr.mxu0 0.0
        %683 = vmatpush1.msra.mxu0 0.0
        %684 = vmatprep.subr.mxu0 0.0
        %685 = vmatpush1.msra.mxu0 0.0
        %686 = vmatprep.subr.mxu0 0.0
        %687 = vmatpush1.msra.mxu0 0.0
        %688 = vmatprep.subr.mxu0 0.0
        %689 = vmatpush1.msra.mxu0 0.0
        %690 = vmatprep.subr.mxu0 0.0
        %691 = vmatpush1.msra.mxu0 0.0
        %692 = vmatprep.subr.mxu0 0.0
        %693 = vmatpush1.msra.mxu0 0.0
        %694 = vmatprep.subr.mxu0 0.0
        %695 = vmatpush1.msra.mxu0 0.0
        %696 = vmatprep.subr.mxu0 0.0
        %697 = vmatpush1.msra.mxu0 0.0
        %698 = vmatprep.subr.mxu0 0.0
        %699 = vmatpush1.msra.mxu0 0.0
        %700 = vmatprep.subr.mxu0 0.0
        %701 = vmatpush1.msra.mxu0 0.0
        %702 = vmatprep.subr.mxu0 0.0
        %703 = vmatpush1.msra.mxu0 %v675
        %704 = vmatprep.subr.mxu0 0.0
        %705 = vmatpush1.msra.mxu0 %v674
        %706 = vmatprep.subr.mxu0 0.0
        %707 = vmatpush1.msra.mxu0 %v673
        %708 = vmatprep.subr.mxu0 0.0
        %709 = vmatpush2.msra.mxu0 0.0
        %710 = vmatprep.subr.mxu0 0.0
        %711 = vmatpush2.msra.mxu0 0.0
        %712 = vmatprep.subr.mxu0 0.0
        %713 = vmatpush2.msra.mxu0 0.0
        %714 = vmatprep.subr.mxu0 0.0
        %715 = vmatpush2.msra.mxu0 0.0
        %716 = vmatprep.subr.mxu0 0.0
        %717 = vmatpush2.msra.mxu0 0.0
        %718 = vmatprep.subr.mxu0 0.0
        %719 = vmatpush2.msra.mxu0 0.0
        %720 = vmatprep.subr.mxu0 0.0
        %721 = vmatpush2.msra.mxu0 0.0
        %722 = vmatprep.subr.mxu0 0.0
        %723 = vmatpush2.msra.mxu0 0.0
        %724 = vmatprep.subr.mxu0 0.0
        %725 = vmatpush2.msra.mxu0 0.0
        %726 = vmatprep.subr.mxu0 0.0
        %727 = vmatpush2.msra.mxu0 0.0
        %728 = vmatprep.subr.mxu0 0.0
        %729 = vmatpush2.msra.mxu0 0.0
        %730 = vmatprep.subr.mxu0 0.0
        %731 = vmatpush2.msra.mxu0 0.0
        %732 = vmatprep.subr.mxu0 0.0
        %733 = vmatpush2.msra.mxu0 0.0
        %734 = vmatprep.subr.mxu0 0.0
        %735 = vmatpush2.msra.mxu0 0.0
        %736 = vmatprep.subr.mxu0 0.0
        %737 = vmatpush2.msra.mxu0 0.0
        %738 = vmatprep.subr.mxu0 0.0
        %739 = vmatpush2.msra.mxu0 0.0
        %740 = vmatprep.mubr.f32.mxu0 0.0
        %741 = vmatmul.mubr.f32.gmra.mxu0 %v568
        %v742 = vpop.f32.mrf.mxu0
        %v743 = vadd.f32 0.0, %v742
        %v744 = vpop.f32.mrf.mxu0
        %745 = vmatprep.mubr.f32.mxu0 0.0
        %746 = vmatmul.mubr.f32.gmra.mxu0 %v571
        %v747 = vpop.f32.mrf.mxu0
        %v748 = vadd.f32 0.0, %v747
        %v749 = vpop.f32.mrf.mxu0
        %750 = vmatprep.mubr.f32.mxu0 0.0
        %751 = vmatmul.mubr.f32.gmra.mxu0 %v574
        %v752 = vpop.f32.mrf.mxu0
        %v753 = vadd.f32 0.0, %v752
        %v754 = vpop.f32.mrf.mxu0
        %755 = vmatprep.mubr.f32.mxu0 0.0
        %756 = vmatmul.mubr.f32.gmra.mxu0 %v577
        %v757 = vpop.f32.mrf.mxu0
        %v758 = vadd.f32 0.0, %v757
        %v759 = vpop.f32.mrf.mxu0
        %760 = vdwg.mxu0
        %v761 = vadd.f32 %v546, %v743
        %v762 = vadd.f32 %v551, %v748
        %v763 = vadd.f32 %v556, %v753
        %v764 = vadd.f32 %v561, %v758
        %s765 = scalar_lea.vmem %s206, 32 [#allocation6]
        %766 = vst [vmem:[%s765] sm:$0xff] %v761
        %767 = vst [vmem:[%s765 + $0x8] sm:$0xff] %v762
        %768 = vst [vmem:[%s765 + $0x10] sm:$0xff] %v763
        %769 = vst [vmem:[%s765 + $0x18] sm:$0xff] %v764
        %s770 = scalar_lea.vmem [#allocation2], 48
        %v771 = vld [vmem:[%s770] sm:$0xff]
        %v772 = vld [vmem:[%s770 + $0x8] sm:$0xff]
        %v773 = vld [vmem:[%s770 + $0x10] sm:$0xff]
        %774 = vmatprep.subr.mxu0 0.0
        %775 = vmatpush1.msra.mxu0 0.0
        %776 = vmatprep.subr.mxu0 0.0
        %777 = vmatpush1.msra.mxu0 0.0
        %778 = vmatprep.subr.mxu0 0.0
        %779 = vmatpush1.msra.mxu0 0.0
        %780 = vmatprep.subr.mxu0 0.0
        %781 = vmatpush1.msra.mxu0 0.0
        %782 = vmatprep.subr.mxu0 0.0
        %783 = vmatpush1.msra.mxu0 0.0
        %784 = vmatprep.subr.mxu0 0.0
        %785 = vmatpush1.msra.mxu0 0.0
        %786 = vmatprep.subr.mxu0 0.0
        %787 = vmatpush1.msra.mxu0 0.0
        %788 = vmatprep.subr.mxu0 0.0
        %789 = vmatpush1.msra.mxu0 0.0
        %790 = vmatprep.subr.mxu0 0.0
        %791 = vmatpush1.msra.mxu0 0.0
        %792 = vmatprep.subr.mxu0 0.0
        %793 = vmatpush1.msra.mxu0 0.0
        %794 = vmatprep.subr.mxu0 0.0
        %795 = vmatpush1.msra.mxu0 0.0
        %796 = vmatprep.subr.mxu0 0.0
        %797 = vmatpush1.msra.mxu0 0.0
        %798 = vmatprep.subr.mxu0 0.0
        %799 = vmatpush1.msra.mxu0 0.0
        %800 = vmatprep.subr.mxu0 0.0
        %801 = vmatpush1.msra.mxu0 %v773
        %802 = vmatprep.subr.mxu0 0.0
        %803 = vmatpush1.msra.mxu0 %v772
        %804 = vmatprep.subr.mxu0 0.0
        %805 = vmatpush1.msra.mxu0 %v771
        %806 = vmatprep.subr.mxu0 0.0
        %807 = vmatpush2.msra.mxu0 0.0
        %808 = vmatprep.subr.mxu0 0.0
        %809 = vmatpush2.msra.mxu0 0.0
        %810 = vmatprep.subr.mxu0 0.0
        %811 = vmatpush2.msra.mxu0 0.0
        %812 = vmatprep.subr.mxu0 0.0
        %813 = vmatpush2.msra.mxu0 0.0
        %814 = vmatprep.subr.mxu0 0.0
        %815 = vmatpush2.msra.mxu0 0.0
        %816 = vmatprep.subr.mxu0 0.0
        %817 = vmatpush2.msra.mxu0 0.0
        %818 = vmatprep.subr.mxu0 0.0
        %819 = vmatpush2.msra.mxu0 0.0
        %820 = vmatprep.subr.mxu0 0.0
        %821 = vmatpush2.msra.mxu0 0.0
        %822 = vmatprep.subr.mxu0 0.0
        %823 = vmatpush2.msra.mxu0 0.0
        %824 = vmatprep.subr.mxu0 0.0
        %825 = vmatpush2.msra.mxu0 0.0
        %826 = vmatprep.subr.mxu0 0.0
        %827 = vmatpush2.msra.mxu0 0.0
        %828 = vmatprep.subr.mxu0 0.0
        %829 = vmatpush2.msra.mxu0 0.0
        %830 = vmatprep.subr.mxu0 0.0
        %831 = vmatpush2.msra.mxu0 0.0
        %832 = vmatprep.subr.mxu0 0.0
        %833 = vmatpush2.msra.mxu0 0.0
        %834 = vmatprep.subr.mxu0 0.0
        %835 = vmatpush2.msra.mxu0 0.0
        %836 = vmatprep.subr.mxu0 0.0
        %837 = vmatpush2.msra.mxu0 0.0
        %838 = vmatprep.mubr.f32.mxu0 0.0
        %839 = vmatmul.mubr.f32.gmra.mxu0 %v568
        %v840 = vpop.f32.mrf.mxu0
        %v841 = vadd.f32 0.0, %v840
        %v842 = vpop.f32.mrf.mxu0
        %843 = vmatprep.mubr.f32.mxu0 0.0
        %844 = vmatmul.mubr.f32.gmra.mxu0 %v571
        %v845 = vpop.f32.mrf.mxu0
        %v846 = vadd.f32 0.0, %v845
        %v847 = vpop.f32.mrf.mxu0
        %848 = vmatprep.mubr.f32.mxu0 0.0
        %849 = vmatmul.mubr.f32.gmra.mxu0 %v574
        %v850 = vpop.f32.mrf.mxu0
        %v851 = vadd.f32 0.0, %v850
        %v852 = vpop.f32.mrf.mxu0
        %853 = vmatprep.mubr.f32.mxu0 0.0
        %854 = vmatmul.mubr.f32.gmra.mxu0 %v577
        %v855 = vpop.f32.mrf.mxu0
        %v856 = vadd.f32 0.0, %v855
        %v857 = vpop.f32.mrf.mxu0
        %858 = vdwg.mxu0
        %v859 = vadd.f32 %v546, %v841
        %v860 = vadd.f32 %v551, %v846
        %v861 = vadd.f32 %v556, %v851
        %v862 = vadd.f32 %v561, %v856
        %s863 = scalar_lea.vmem %s206, 64 [#allocation6]
        %864 = vst [vmem:[%s863] sm:$0xff] %v859
        %865 = vst [vmem:[%s863 + $0x8] sm:$0xff] %v860
        %866 = vst [vmem:[%s863 + $0x10] sm:$0xff] %v861
        %867 = vst [vmem:[%s863 + $0x18] sm:$0xff] %v862
        %s868 = scalar_lea.vmem [#allocation2], 72
        %v869 = vld [vmem:[%s868] sm:$0xff]
        %v870 = vld [vmem:[%s868 + $0x8] sm:$0xff]
        %v871 = vld [vmem:[%s868 + $0x10] sm:$0xff]
        %872 = vmatprep.subr.mxu0 0.0
        %873 = vmatpush1.msra.mxu0 0.0
        %874 = vmatprep.subr.mxu0 0.0
        %875 = vmatpush1.msra.mxu0 0.0
        %876 = vmatprep.subr.mxu0 0.0
        %877 = vmatpush1.msra.mxu0 0.0
        %878 = vmatprep.subr.mxu0 0.0
        %879 = vmatpush1.msra.mxu0 0.0
        %880 = vmatprep.subr.mxu0 0.0
        %881 = vmatpush1.msra.mxu0 0.0
        %882 = vmatprep.subr.mxu0 0.0
        %883 = vmatpush1.msra.mxu0 0.0
        %884 = vmatprep.subr.mxu0 0.0
        %885 = vmatpush1.msra.mxu0 0.0
        %886 = vmatprep.subr.mxu0 0.0
        %887 = vmatpush1.msra.mxu0 0.0
        %888 = vmatprep.subr.mxu0 0.0
        %889 = vmatpush1.msra.mxu0 0.0
        %890 = vmatprep.subr.mxu0 0.0
        %891 = vmatpush1.msra.mxu0 0.0
        %892 = vmatprep.subr.mxu0 0.0
        %893 = vmatpush1.msra.mxu0 0.0
        %894 = vmatprep.subr.mxu0 0.0
        %895 = vmatpush1.msra.mxu0 0.0
        %896 = vmatprep.subr.mxu0 0.0
        %897 = vmatpush1.msra.mxu0 0.0
        %898 = vmatprep.subr.mxu0 0.0
        %899 = vmatpush1.msra.mxu0 %v871
        %900 = vmatprep.subr.mxu0 0.0
        %901 = vmatpush1.msra.mxu0 %v870
        %902 = vmatprep.subr.mxu0 0.0
        %903 = vmatpush1.msra.mxu0 %v869
        %904 = vmatprep.subr.mxu0 0.0
        %905 = vmatpush2.msra.mxu0 0.0
        %906 = vmatprep.subr.mxu0 0.0
        %907 = vmatpush2.msra.mxu0 0.0
        %908 = vmatprep.subr.mxu0 0.0
        %909 = vmatpush2.msra.mxu0 0.0
        %910 = vmatprep.subr.mxu0 0.0
        %911 = vmatpush2.msra.mxu0 0.0
        %912 = vmatprep.subr.mxu0 0.0
        %913 = vmatpush2.msra.mxu0 0.0
        %914 = vmatprep.subr.mxu0 0.0
        %915 = vmatpush2.msra.mxu0 0.0
        %916 = vmatprep.subr.mxu0 0.0
        %917 = vmatpush2.msra.mxu0 0.0
        %918 = vmatprep.subr.mxu0 0.0
        %919 = vmatpush2.msra.mxu0 0.0
        %920 = vmatprep.subr.mxu0 0.0
        %921 = vmatpush2.msra.mxu0 0.0
        %922 = vmatprep.subr.mxu0 0.0
        %923 = vmatpush2.msra.mxu0 0.0
        %924 = vmatprep.subr.mxu0 0.0
        %925 = vmatpush2.msra.mxu0 0.0
        %926 = vmatprep.subr.mxu0 0.0
        %927 = vmatpush2.msra.mxu0 0.0
        %928 = vmatprep.subr.mxu0 0.0
        %929 = vmatpush2.msra.mxu0 0.0
        %930 = vmatprep.subr.mxu0 0.0
        %931 = vmatpush2.msra.mxu0 0.0
        %932 = vmatprep.subr.mxu0 0.0
        %933 = vmatpush2.msra.mxu0 0.0
        %934 = vmatprep.subr.mxu0 0.0
        %935 = vmatpush2.msra.mxu0 0.0
        %936 = vmatprep.mubr.f32.mxu0 0.0
        %937 = vmatmul.mubr.f32.gmra.mxu0 %v568
        %v938 = vpop.f32.mrf.mxu0
        %v939 = vadd.f32 0.0, %v938
        %v940 = vpop.f32.mrf.mxu0
        %941 = vmatprep.mubr.f32.mxu0 0.0
        %942 = vmatmul.mubr.f32.gmra.mxu0 %v571
        %v943 = vpop.f32.mrf.mxu0
        %v944 = vadd.f32 0.0, %v943
        %v945 = vpop.f32.mrf.mxu0
        %946 = vmatprep.mubr.f32.mxu0 0.0
        %947 = vmatmul.mubr.f32.gmra.mxu0 %v574
        %v948 = vpop.f32.mrf.mxu0
        %v949 = vadd.f32 0.0, %v948
        %v950 = vpop.f32.mrf.mxu0
        %951 = vmatprep.mubr.f32.mxu0 0.0
        %952 = vmatmul.mubr.f32.gmra.mxu0 %v577
        %v953 = vpop.f32.mrf.mxu0
        %v954 = vadd.f32 0.0, %v953
        %v955 = vpop.f32.mrf.mxu0
        %956 = vdwg.mxu0
        %v957 = vadd.f32 %v546, %v939
        %v958 = vadd.f32 %v551, %v944
        %v959 = vadd.f32 %v556, %v949
        %v960 = vadd.f32 %v561, %v954
        %s961 = scalar_lea.vmem %s206, 96 [#allocation6]
        %962 = vst [vmem:[%s961] sm:$0xff] %v957
        %963 = vst [vmem:[%s961 + $0x8] sm:$0xff] %v958
        %964 = vst [vmem:[%s961 + $0x10] sm:$0xff] %v959
        %965 = vst [vmem:[%s961 + $0x18] sm:$0xff] %v960
        %s966 = sand.u32 %s116, 1
        %s967 = scalar_lea.sflag [#allocation5], %s966
        %s968 = sand.u32 %s116, 1
        %s969 = smul.addr %s968, 128
        %s970 = scalar_lea.vmem [#allocation6], %s969
        // Predicated region
        $region41: #{tpu_custom_call.1} parent=35 // pred_check
          %p971 = pneg %p126
        $region42: #{tpu_custom_call.1} parent=35 // pred_check_branch
          %973 = sbr.rel (%p971) target = $region44
        $region43: #{tpu_custom_call.1} parent=35 // pred_region
          %s974 = smul.u32 4, %s19
          %s976 = ssub.s32 2048, 2048
          %977 = vsyncadd %s967, %s976
          %s978 = smul.addr %s974, 4
          %s979 = smul.addr %s978, 128
          %s980 = scalar_lea.hbm %s4, %s979
          %s981 = sshll.u32 %s970, 4
          %s982 = int_to_ptr.vmem [resolvable:$true] %s981
          %987 = dma.vmem_to_hbm [thread:$0]  %s982, 2048, %s980, %s967, 128, 128, 8
        $region44: #{tpu_custom_call.1} parent=35 // pred_fallthru
          _
      $region36: #{tpu_custom_call.1} parent=5 // pred_fallthru
        _
      %p988 = scmp.le.s32.totalorder 2, %s14
      // Predicated region
      $region45: #{tpu_custom_call.1} parent=5 // pred_check
        %p989 = pneg %p988
      $region46: #{tpu_custom_call.1} parent=5 // pred_check_branch
        %991 = sbr.rel (%p989) target = $region48
      $region47: #{tpu_custom_call.1} parent=5 // pred_region
        %s992 = ssub.s32 %s14, 2
        // Predicated region
        $region49: #{tpu_custom_call.1} parent=47 // pred_check
          %p993 = pneg %p132
        $region50: #{tpu_custom_call.1} parent=47 // pred_check_branch
          %995 = sbr.rel (%p993) target = $region52
        $region51: #{tpu_custom_call.1} parent=47 // pred_region
          %s996 = sand.u32 %s117, 1
          %s997 = scalar_lea.sflag [#allocation5], %s996
          %s998 = sand.u32 %s117, 1
          %s999 = smul.addr %s998, 128
          %s1000 = scalar_lea.vmem [#allocation6], %s999
          %1001 = dma.done %s997, 2048
        $region52: #{tpu_custom_call.1} parent=47 // pred_fallthru
          _
      $region48: #{tpu_custom_call.1} parent=5 // pred_fallthru
        _
    $region6: #{tpu_custom_call.1} parent=1 // loop_footer
      %s18 = sadd.s32 1, %s14
    $region7: #{tpu_custom_call.1} parent=1 // loop_footer_branch
      %13 = sbr.rel target = $region3
    $region8: #{tpu_custom_call.1} parent=1 // loop_exit
      _
    %1002 = vsyncpa [#allocation4], 1
    %s1003 = scalar_lea.sflag [#allocation4], 1
    %1004 = vsyncpa %s1003, 1
    %1005 = vsyncpa [#allocation5], 1
    %s1006 = scalar_lea.sflag [#allocation5], 1
    %1007 = vsyncpa %s1006, 1

</llo_original>
